<compile_context>
chip_gen: v7x
topology: tpu7x:2x2x1
jax: 0.10.0
libtpu: 0.0.40
codegen_flags: <defaults>
</compile_context>

<pallas_src>
import functools

import numpy as np
import jax
import jax.numpy as jnp
from jax import lax
from jax.experimental import pallas as pl
from jax.experimental.pallas import tpu as pltpu

S_OFF = 8  # leading zero rows per block: top halo for batch 0, keeps data rows 8-aligned


def _round_up(a, m):
    return ((a + m - 1) // m) * m


def _sam_kernel(x_ref, ximg_ref, w12_ref, w3_ref, b1_ref, b2_ref, b3_ref,
                out1_ref, img_out_ref, img_scr,
                *, H, B_TILE, HP, LF, LI, RV):
    # ---- conv1 + conv2 fused (they share the x taps): one bf16 matmul per kh.
    # x arrives pre-padded from HBM (zero halos, 8-aligned per-batch stride HP),
    # so each kh tap is just a row-shifted slice of the block.
    def xtap(kh):
        return x_ref[pl.ds(S_OFF - 1 + kh, RV), :].astype(jnp.bfloat16)

    acc12 = jnp.dot(xtap(0), w12_ref[0], preferred_element_type=jnp.float32)
    acc12 += jnp.dot(xtap(1), w12_ref[1], preferred_element_type=jnp.float32)
    acc12 += jnp.dot(xtap(2), w12_ref[2], preferred_element_type=jnp.float32)

    x1_all = acc12[:, :LF] + b1_ref[...]        # conv1(x) + b1   (f32)
    img_all = acc12[:, LF:] + b2_ref[...]       # conv2(x) + b2   (f32)

    # ---- img = conv2(x) + b2 + x_img ; write it out and stage it for conv3.
    # Zeroing the whole scratch every step provides conv3's zero halos and stays
    # correct when the "parallel" batch axis is split across TensorCores.
    img_scr[...] = jnp.zeros_like(img_scr)
    for b in range(B_TILE):
        r0 = b * HP                                           # 8-aligned
        img_b = img_all[r0:r0 + H, :] + ximg_ref[b]
        img_out_ref[b] = img_b
        img_scr[pl.ds(S_OFF + r0, H), :] = img_b              # aligned, unmasked vst

    # ---- conv3(img): same 3 shifted bf16 matmuls, then the sigmoid gate on the
    # EUP (exp + approx reciprocal, no f32 divide).
    def itap(kh):
        return img_scr[pl.ds(S_OFF - 1 + kh, RV), :].astype(jnp.bfloat16)

    acc3 = jnp.dot(itap(0), w3_ref[0], preferred_element_type=jnp.float32)
    acc3 += jnp.dot(itap(1), w3_ref[1], preferred_element_type=jnp.float32)
    acc3 += jnp.dot(itap(2), w3_ref[2], preferred_element_type=jnp.float32)
    gate = pl.reciprocal(1.0 + jnp.exp(-(acc3 + b3_ref[...])), approx=True)

    # ---- out = conv1(x) * gate + x  (residual read from the f32 block, aligned rows)
    for b in range(B_TILE):
        r0 = b * HP
        x_b = x_ref[pl.ds(S_OFF + r0, H), :]
        out1_ref[b] = x1_all[r0:r0 + H, :] * gate[r0:r0 + H, :] + x_b


def _merged_block_weights(w_oihw, W, L_in, L_out):
    """Per-kh (L_in, L_out) block-banded matrices; the 3 kw taps are pre-summed."""
    w = np.asarray(w_oihw, dtype=np.float32)                  # (Cout, Cin, 3, 3)
    Cout, Cin, KH, KW = w.shape
    m = np.zeros((KH, L_in, L_out), dtype=np.float32)
    for kh in range(KH):
        for kw in range(KW):
            blk = w[:, :, kh, kw].T                           # (Cin, Cout)
            for wo in range(W):
                wi = wo + kw - 1                              # padding=1 -> shift kw-1
                if 0 <= wi < W:
                    m[kh, wi * Cin:(wi + 1) * Cin,
                          wo * Cout:(wo + 1) * Cout] += blk
    return m


def _bias_row(b, W, L):
    b = np.asarray(b, dtype=np.float32)
    row = np.zeros((1, L), dtype=np.float32)
    row[0, :W * b.shape[0]] = np.tile(b, W)
    return row


def _from_slab(s, C, W):
    N, H, _ = s.shape
    return jnp.transpose(s[:, :, :W * C].reshape(N, H, W, C), (0, 3, 1, 2))


def sam_pallas(x, x_img, params, b_tile=None):
    N, C, H, W = x.shape
    Ni, inc, Hi, Wi = x_img.shape
    assert (Ni, Hi, Wi) == (N, H, W)

    LF = _round_up(W * C, 128)        # lane-dense feature slab width
    LI = _round_up(W * inc, 128)      # lane-dense image slab width
    HP = _round_up(H + 1, 8)          # 8-aligned per-batch row stride (data + halo rows)

    def footprint(bt):                # rough per-step VMEM bytes
        r_blk = bt * HP + 2 * S_OFF
        x_blk = r_blk * LF * 4
        ximg_blk = bt * H * LI * 4
        o1 = bt * H * LF * 4
        o2 = bt * H * LI * 4
        wts = 3 * LF * (LF + LI) * 2 + 3 * LI * LF * 2 + (2 * LF + LI) * 4
        scr = r_blk * LI * 4
        return 2 * (x_blk + ximg_blk + o1 + o2) + wts + scr   # in/out double-buffered

    try:                              # per-generation VMEM budget (fallback = v7x 64 MiB/TC)
        vmem_cap = int(pltpu.get_tpu_info().vmem_capacity_bytes)
    except Exception:
        vmem_cap = 64 * 1024 * 1024
    budget = int(vmem_cap * 0.75)

    if b_tile is None:
        b_tile = max(1, 512 // HP)                 # ~512 MXU rows per grid step
        while b_tile > 1 and footprint(b_tile) > budget:
            b_tile -= 1
        min_steps = 2 if N >= 2 else 1             # keep both v7x TensorCores busy
        n_steps = max(min_steps, -(-N // b_tile))
        b_tile = -(-N // n_steps)
    b_tile = max(1, b_tile)
    n_steps = -(-N // b_tile)
    n_pad = n_steps * b_tile

    R_BLK = b_tile * HP + 2 * S_OFF   # padded x-block rows per grid step (mult of 8)
    RV = b_tile * HP                  # matmul M rows (8-aligned)

    # ---- HBM-side layout: NHWC slabs, lane-padded; x also gets its halos here.
    # TODO(synk): keep NHWC slabs end-to-end in the surrounding model so these
    #             transposes don't cost an extra HBM pass per call.
    def to_slab(a, L):
        n, c, h, w = a.shape
        s = jnp.transpose(a, (0, 2, 3, 1)).reshape(n, h, w * c).astype(jnp.float32)
        return jnp.pad(s, ((0, n_pad - n), (0, 0), (0, L - w * c)))

    ximg2d = to_slab(x_img, LI)                                      # (n_pad, H, LI)
    xs = jnp.pad(to_slab(x, LF), ((0, 0), (0, HP - H), (0, 0)))      # (n_pad, HP, LF)
    xs = xs.reshape(n_steps, b_tile * HP, LF)
    xs = jnp.pad(xs, ((0, 0), (S_OFF, S_OFF), (0, 0)))               # zero halo rows
    x2d = xs.reshape(n_steps * R_BLK, LF)

    # ---- weights: block-banded per-kh matrices, bf16, conv1|conv2 concatenated.
    m1 = _merged_block_weights(params['w1'], W, LF, LF)              # (3, LF, LF)
    m2 = _merged_block_weights(params['w2'], W, LF, LI)              # (3, LF, LI)
    w12 = jnp.asarray(np.concatenate([m1, m2], axis=2), dtype=jnp.bfloat16)
    w3 = jnp.asarray(_merged_block_weights(params['w3'], W, LI, LF), dtype=jnp.bfloat16)
    b1r = jnp.asarray(_bias_row(params['b1'], W, LF))
    b2r = jnp.asarray(_bias_row(params['b2'], W, LI))
    b3r = jnp.asarray(_bias_row(params['b3'], W, LF))

    kernel = functools.partial(_sam_kernel, H=H, B_TILE=b_tile, HP=HP,
                               LF=LF, LI=LI, RV=RV)

    def const_spec(shape):            # grid-invariant -> single-buffered
        nd = len(shape)
        return pl.BlockSpec(shape, lambda n, _nd=nd: (0,) * _nd,
                            pipeline_mode=pl.Buffered(1))

    vmem_limit = int(min(max(2 * footprint(b_tile), 16 * 1024 * 1024), budget))

    out1, img = pl.pallas_call(
        kernel,
        out_shape=(jax.ShapeDtypeStruct((n_pad, H, LF), jnp.float32),
                   jax.ShapeDtypeStruct((n_pad, H, LI), jnp.float32)),
        grid_spec=pltpu.PrefetchScalarGridSpec(
            num_scalar_prefetch=0,
            grid=(n_steps,),
            in_specs=[
                pl.BlockSpec((R_BLK, LF), lambda n: (n, 0)),          # pre-padded x slab
                pl.BlockSpec((b_tile, H, LI), lambda n: (n, 0, 0)),   # x_img slab
                const_spec((3, LF, LF + LI)),                         # conv1|conv2 weights
                const_spec((3, LI, LF)),                              # conv3 weights
                const_spec((1, LF)),                                  # b1
                const_spec((1, LI)),                                  # b2
                const_spec((1, LF)),                                  # b3
            ],
            out_specs=(
                pl.BlockSpec((b_tile, H, LF), lambda n: (n, 0, 0)),   # x1*gate + x
                pl.BlockSpec((b_tile, H, LI), lambda n: (n, 0, 0)),   # img
            ),
            scratch_shapes=[pltpu.VMEM((R_BLK, LI), jnp.float32)],    # img + zero halos
        ),
        compiler_params=pltpu.CompilerParams(
            dimension_semantics=("parallel",),        # batches over both v7x TCs
            vmem_limit_bytes=vmem_limit,
        ),
    )(x2d, ximg2d, w12, w3, b1r, b2r, b3r)

    return _from_slab(out1[:N], C, W), _from_slab(img[:N], inc, W)


def ref_forward(x, x_img, p):
    """Pure-JAX reference mirroring the PyTorch SAM module (NCHW, f32)."""
    dn = ('NCHW', 'OIHW', 'NCHW')
    c1 = lax.conv_general_dilated(x, p['w1'], (1, 1), 'SAME',
                                  dimension_numbers=dn) + p['b1'][None, :, None, None]
    img = lax.conv_general_dilated(x, p['w2'], (1, 1), 'SAME',
                                   dimension_numbers=dn) + p['b2'][None, :, None, None] + x_img
    c3 = lax.conv_general_dilated(img, p['w3'], (1, 1), 'SAME',
                                  dimension_numbers=dn) + p['b3'][None, :, None, None]
    gate = 1.0 / (1.0 + jnp.exp(-c3))
    return c1 * gate + x, img


if __name__ == "__main__":
    key = jax.random.PRNGKey(0)
    N, n_feat, inc, H, W = 2, 4, 3, 16, 16

    ks = jax.random.split(key, 8)
    params = {
        'w1': jax.random.normal(ks[0], (n_feat, n_feat, 3, 3), jnp.float32) * 0.1,
        'b1': jax.random.normal(ks[1], (n_feat,), jnp.float32) * 0.05,
        'w2': jax.random.normal(ks[2], (inc, n_feat, 3, 3), jnp.float32) * 0.1,
        'b2': jax.random.normal(ks[3], (inc,), jnp.float32) * 0.05,
        'w3': jax.random.normal(ks[4], (n_feat, inc, 3, 3), jnp.float32) * 0.1,
        'b3': jax.random.normal(ks[5], (n_feat,), jnp.float32) * 0.05,
    }
    x = jax.random.normal(ks[6], (N, n_feat, H, W), jnp.float32)
    x_img = jax.random.normal(ks[7], (N, inc, H, W), jnp.float32)

    out1, img = sam_pallas(x, x_img, params)
    out1 = jax.block_until_ready(out1)
    img = jax.block_until_ready(img)

    ref1, refimg = ref_forward(x, x_img, params)
    ref1 = jax.block_until_ready(ref1)
    refimg = jax.block_until_ready(refimg)

    assert out1.shape == (N, n_feat, H, W) and img.shape == (N, inc, H, W)
    e1 = float(jnp.max(jnp.abs(out1 - ref1)))
    e2 = float(jnp.max(jnp.abs(img - refimg)))
    # Tolerance loosened vs the f32 version: matmul operands are bf16 (MXU-native).
    assert jnp.allclose(out1, ref1, rtol=3e-2, atol=3e-2), f"out max abs err = {e1}"
    assert jnp.allclose(img, refimg, rtol=3e-2, atol=3e-2), f"img max abs err = {e2}"
    print("KERNEL_OK")
</pallas_src>

<mosaic_0001>
module attributes {stable_mosaic.version = 11 : i64} {
  func.func @_sam_kernel(%arg0: i32, %arg1: memref<40x128xf32, #tpu.memory_space<vmem>>, %arg2: memref<1x16x128xf32, #tpu.memory_space<vmem>>, %arg3: memref<3x128x256xbf16, #tpu.memory_space<vmem>>, %arg4: memref<3x128x128xbf16, #tpu.memory_space<vmem>>, %arg5: memref<1x128xf32, #tpu.memory_space<vmem>>, %arg6: memref<1x128xf32, #tpu.memory_space<vmem>>, %arg7: memref<1x128xf32, #tpu.memory_space<vmem>>, %arg8: memref<1x16x128xf32, #tpu.memory_space<vmem>>, %arg9: memref<1x16x128xf32, #tpu.memory_space<vmem>>, %arg10: memref<40x128xf32, #tpu.memory_space<vmem>>) attributes {dimension_semantics = [#tpu.dimension_semantics<parallel>], iteration_bounds = array<i64: 2>, scalar_prefetch = 0 : i64, scratch_operands = 1 : i64, tpu.core_type = #tpu.core_type<tc>, window_params = [{transform_indices = @transform_0, window_bounds = array<i64: 40, 128>}, {transform_indices = @transform_1, window_bounds = array<i64: 1, 16, 128>}, {pipeline_mode = #tpu.pipeline_mode<synchronous>, transform_indices = @transform_2, window_bounds = array<i64: 3, 128, 256>}, {pipeline_mode = #tpu.pipeline_mode<synchronous>, transform_indices = @transform_3, window_bounds = array<i64: 3, 128, 128>}, {pipeline_mode = #tpu.pipeline_mode<synchronous>, transform_indices = @transform_4, window_bounds = array<i64: 1, 128>}, {pipeline_mode = #tpu.pipeline_mode<synchronous>, transform_indices = @transform_5, window_bounds = array<i64: 1, 128>}, {pipeline_mode = #tpu.pipeline_mode<synchronous>, transform_indices = @transform_6, window_bounds = array<i64: 1, 128>}, {transform_indices = @transform_7, window_bounds = array<i64: 1, 16, 128>}, {transform_indices = @transform_8, window_bounds = array<i64: 1, 16, 128>}]} {
    %c7 = arith.constant 7 : index
    %c0 = arith.constant 0 : index
    %0 = vector.load %arg1[%c7, %c0] : memref<40x128xf32, #tpu.memory_space<vmem>>, vector<24x128xf32>
    %1 = arith.truncf %0 : vector<24x128xf32> to vector<24x128xbf16>
    %c0_0 = arith.constant 0 : index
    %c0_1 = arith.constant 0 : index
    %c0_2 = arith.constant 0 : index
    %2 = vector.load %arg3[%c0_0, %c0_1, %c0_2] : memref<3x128x256xbf16, #tpu.memory_space<vmem>>, vector<1x128x256xbf16>
    %3 = vector.shape_cast %2 : vector<1x128x256xbf16> to vector<128x256xbf16>
    %cst = arith.constant dense<0.000000e+00> : vector<24x256xf32>
    %4 = tpu.matmul %1, %3, %cst {dimension_numbers = #tpu.dot_dimension_numbers<[1], [0], [0], [1], [0, 0, 1, 1], [], []>} : vector<24x128xbf16>, vector<128x256xbf16>, vector<24x256xf32> -> vector<24x256xf32>
    %c8 = arith.constant 8 : index
    %c0_3 = arith.constant 0 : index
    %5 = vector.load %arg1[%c8, %c0_3] : memref<40x128xf32, #tpu.memory_space<vmem>>, vector<24x128xf32>
    %6 = arith.truncf %5 : vector<24x128xf32> to vector<24x128xbf16>
    %c1 = arith.constant 1 : index
    %c0_4 = arith.constant 0 : index
    %c0_5 = arith.constant 0 : index
    %7 = vector.load %arg3[%c1, %c0_4, %c0_5] : memref<3x128x256xbf16, #tpu.memory_space<vmem>>, vector<1x128x256xbf16>
    %8 = vector.shape_cast %7 : vector<1x128x256xbf16> to vector<128x256xbf16>
    %cst_6 = arith.constant dense<0.000000e+00> : vector<24x256xf32>
    %9 = tpu.matmul %6, %8, %cst_6 {dimension_numbers = #tpu.dot_dimension_numbers<[1], [0], [0], [1], [0, 0, 1, 1], [], []>} : vector<24x128xbf16>, vector<128x256xbf16>, vector<24x256xf32> -> vector<24x256xf32>
    %10 = arith.addf %4, %9 : vector<24x256xf32>
    %c9 = arith.constant 9 : index
    %c0_7 = arith.constant 0 : index
    %11 = vector.load %arg1[%c9, %c0_7] : memref<40x128xf32, #tpu.memory_space<vmem>>, vector<24x128xf32>
    %12 = arith.truncf %11 : vector<24x128xf32> to vector<24x128xbf16>
    %c2 = arith.constant 2 : index
    %c0_8 = arith.constant 0 : index
    %c0_9 = arith.constant 0 : index
    %13 = vector.load %arg3[%c2, %c0_8, %c0_9] : memref<3x128x256xbf16, #tpu.memory_space<vmem>>, vector<1x128x256xbf16>
    %14 = vector.shape_cast %13 : vector<1x128x256xbf16> to vector<128x256xbf16>
    %cst_10 = arith.constant dense<0.000000e+00> : vector<24x256xf32>
    %15 = tpu.matmul %12, %14, %cst_10 {dimension_numbers = #tpu.dot_dimension_numbers<[1], [0], [0], [1], [0, 0, 1, 1], [], []>} : vector<24x128xbf16>, vector<128x256xbf16>, vector<24x256xf32> -> vector<24x256xf32>
    %16 = arith.addf %10, %15 : vector<24x256xf32>
    %17 = vector.extract_strided_slice %16 {offsets = [0, 0], sizes = [24, 128], strides = [1, 1]} : vector<24x256xf32> to vector<24x128xf32>
    %c0_11 = arith.constant 0 : index
    %c0_12 = arith.constant 0 : index
    %18 = vector.load %arg5[%c0_11, %c0_12] : memref<1x128xf32, #tpu.memory_space<vmem>>, vector<1x128xf32>
    %19 = vector.broadcast %18 : vector<1x128xf32> to vector<24x128xf32>
    %20 = arith.addf %17, %19 : vector<24x128xf32>
    %21 = vector.extract_strided_slice %16 {offsets = [0, 128], sizes = [24, 128], strides = [1, 1]} : vector<24x256xf32> to vector<24x128xf32>
    %c0_13 = arith.constant 0 : index
    %c0_14 = arith.constant 0 : index
    %22 = vector.load %arg6[%c0_13, %c0_14] : memref<1x128xf32, #tpu.memory_space<vmem>>, vector<1x128xf32>
    %23 = vector.broadcast %22 : vector<1x128xf32> to vector<24x128xf32>
    %24 = arith.addf %21, %23 : vector<24x128xf32>
    %cst_15 = arith.constant 0.000000e+00 : f32
    %25 = vector.broadcast %cst_15 : f32 to vector<40x128xf32>
    %c0_16 = arith.constant 0 : index
    %c0_17 = arith.constant 0 : index
    %26 = vector.load %arg10[%c0_16, %c0_17] : memref<40x128xf32, #tpu.memory_space<vmem>>, vector<40x128xf32>
    tpu.vector_store %arg10[%c0_16, %c0_17], %25 {strides = array<i32>} : memref<40x128xf32, #tpu.memory_space<vmem>>, vector<40x128xf32>,
    %27 = vector.extract_strided_slice %24 {offsets = [0, 0], sizes = [16, 128], strides = [1, 1]} : vector<24x128xf32> to vector<16x128xf32>
    %c0_18 = arith.constant 0 : index
    %c0_19 = arith.constant 0 : index
    %c0_20 = arith.constant 0 : index
    %28 = vector.load %arg2[%c0_18, %c0_19, %c0_20] : memref<1x16x128xf32, #tpu.memory_space<vmem>>, vector<1x16x128xf32>
    %29 = vector.shape_cast %28 : vector<1x16x128xf32> to vector<16x128xf32>
    %30 = arith.addf %27, %29 : vector<16x128xf32>
    %c0_21 = arith.constant 0 : index
    %c0_22 = arith.constant 0 : index
    %c0_23 = arith.constant 0 : index
    %31 = vector.load %arg9[%c0_21, %c0_22, %c0_23] : memref<1x16x128xf32, #tpu.memory_space<vmem>>, vector<1x16x128xf32>
    %32 = vector.shape_cast %31 : vector<1x16x128xf32> to vector<16x128xf32>
    %33 = vector.shape_cast %30 : vector<16x128xf32> to vector<1x16x128xf32>
    tpu.vector_store %arg9[%c0_21, %c0_22, %c0_23], %33 {strides = array<i32>} : memref<1x16x128xf32, #tpu.memory_space<vmem>>, vector<1x16x128xf32>,
    %c8_24 = arith.constant 8 : index
    %c0_25 = arith.constant 0 : index
    %34 = vector.load %arg10[%c8_24, %c0_25] : memref<40x128xf32, #tpu.memory_space<vmem>>, vector<16x128xf32>
    tpu.vector_store %arg10[%c8_24, %c0_25], %30 {strides = array<i32>} : memref<40x128xf32, #tpu.memory_space<vmem>>, vector<16x128xf32>,
    %c7_26 = arith.constant 7 : index
    %c0_27 = arith.constant 0 : index
    %35 = vector.load %arg10[%c7_26, %c0_27] : memref<40x128xf32, #tpu.memory_space<vmem>>, vector<24x128xf32>
    %36 = arith.truncf %35 : vector<24x128xf32> to vector<24x128xbf16>
    %c0_28 = arith.constant 0 : index
    %c0_29 = arith.constant 0 : index
    %c0_30 = arith.constant 0 : index
    %37 = vector.load %arg4[%c0_28, %c0_29, %c0_30] : memref<3x128x128xbf16, #tpu.memory_space<vmem>>, vector<1x128x128xbf16>
    %38 = vector.shape_cast %37 : vector<1x128x128xbf16> to vector<128x128xbf16>
    %cst_31 = arith.constant dense<0.000000e+00> : vector<24x128xf32>
    %39 = tpu.matmul %36, %38, %cst_31 {dimension_numbers = #tpu.dot_dimension_numbers<[1], [0], [0], [1], [0, 0, 1, 1], [], []>} : vector<24x128xbf16>, vector<128x128xbf16>, vector<24x128xf32> -> vector<24x128xf32>
    %c8_32 = arith.constant 8 : index
    %c0_33 = arith.constant 0 : index
    %40 = vector.load %arg10[%c8_32, %c0_33] : memref<40x128xf32, #tpu.memory_space<vmem>>, vector<24x128xf32>
    %41 = arith.truncf %40 : vector<24x128xf32> to vector<24x128xbf16>
    %c1_34 = arith.constant 1 : index
    %c0_35 = arith.constant 0 : index
    %c0_36 = arith.constant 0 : index
    %42 = vector.load %arg4[%c1_34, %c0_35, %c0_36] : memref<3x128x128xbf16, #tpu.memory_space<vmem>>, vector<1x128x128xbf16>
    %43 = vector.shape_cast %42 : vector<1x128x128xbf16> to vector<128x128xbf16>
    %cst_37 = arith.constant dense<0.000000e+00> : vector<24x128xf32>
    %44 = tpu.matmul %41, %43, %cst_37 {dimension_numbers = #tpu.dot_dimension_numbers<[1], [0], [0], [1], [0, 0, 1, 1], [], []>} : vector<24x128xbf16>, vector<128x128xbf16>, vector<24x128xf32> -> vector<24x128xf32>
    %45 = arith.addf %39, %44 : vector<24x128xf32>
    %c9_38 = arith.constant 9 : index
    %c0_39 = arith.constant 0 : index
    %46 = vector.load %arg10[%c9_38, %c0_39] : memref<40x128xf32, #tpu.memory_space<vmem>>, vector<24x128xf32>
    %47 = arith.truncf %46 : vector<24x128xf32> to vector<24x128xbf16>
    %c2_40 = arith.constant 2 : index
    %c0_41 = arith.constant 0 : index
    %c0_42 = arith.constant 0 : index
    %48 = vector.load %arg4[%c2_40, %c0_41, %c0_42] : memref<3x128x128xbf16, #tpu.memory_space<vmem>>, vector<1x128x128xbf16>
    %49 = vector.shape_cast %48 : vector<1x128x128xbf16> to vector<128x128xbf16>
    %cst_43 = arith.constant dense<0.000000e+00> : vector<24x128xf32>
    %50 = tpu.matmul %47, %49, %cst_43 {dimension_numbers = #tpu.dot_dimension_numbers<[1], [0], [0], [1], [0, 0, 1, 1], [], []>} : vector<24x128xbf16>, vector<128x128xbf16>, vector<24x128xf32> -> vector<24x128xf32>
    %51 = arith.addf %45, %50 : vector<24x128xf32>
    %c0_44 = arith.constant 0 : index
    %c0_45 = arith.constant 0 : index
    %52 = vector.load %arg7[%c0_44, %c0_45] : memref<1x128xf32, #tpu.memory_space<vmem>>, vector<1x128xf32>
    %53 = vector.broadcast %52 : vector<1x128xf32> to vector<24x128xf32>
    %54 = arith.addf %51, %53 : vector<24x128xf32>
    %cst_46 = arith.constant 0.000000e+00 : f32
    %55 = vector.broadcast %cst_46 : f32 to vector<24x128xf32>
    %56 = arith.subf %55, %54 : vector<24x128xf32>
    %57 = math.exp %56 : vector<24x128xf32>
    %cst_47 = arith.constant 1.000000e+00 : f32
    %58 = vector.broadcast %cst_47 : f32 to vector<24x128xf32>
    %59 = arith.addf %58, %57 : vector<24x128xf32>
    %60 = tpu.reciprocal %59 {approx = true} : vector<24x128xf32> -> vector<24x128xf32>
    %c8_48 = arith.constant 8 : index
    %c0_49 = arith.constant 0 : index
    %61 = vector.load %arg1[%c8_48, %c0_49] : memref<40x128xf32, #tpu.memory_space<vmem>>, vector<16x128xf32>
    %62 = vector.extract_strided_slice %20 {offsets = [0, 0], sizes = [16, 128], strides = [1, 1]} : vector<24x128xf32> to vector<16x128xf32>
    %63 = vector.extract_strided_slice %60 {offsets = [0, 0], sizes = [16, 128], strides = [1, 1]} : vector<24x128xf32> to vector<16x128xf32>
    %64 = arith.mulf %62, %63 : vector<16x128xf32>
    %65 = arith.addf %64, %61 : vector<16x128xf32>
    %c0_50 = arith.constant 0 : index
    %c0_51 = arith.constant 0 : index
    %c0_52 = arith.constant 0 : index
    %66 = vector.load %arg8[%c0_50, %c0_51, %c0_52] : memref<1x16x128xf32, #tpu.memory_space<vmem>>, vector<1x16x128xf32>
    %67 = vector.shape_cast %66 : vector<1x16x128xf32> to vector<16x128xf32>
    %68 = vector.shape_cast %65 : vector<16x128xf32> to vector<1x16x128xf32>
    tpu.vector_store %arg8[%c0_50, %c0_51, %c0_52], %68 {strides = array<i32>} : memref<1x16x128xf32, #tpu.memory_space<vmem>>, vector<1x16x128xf32>,
    return
  }
  func.func @transform_0(%arg0: i32) -> (i32, i32) {
    %c0_i32 = arith.constant 0 : i32
    %c0_i32_0 = arith.constant 0 : i32
    return %arg0, %c0_i32 : i32, i32
  }
  func.func @transform_1(%arg0: i32) -> (i32, i32, i32) {
    %c0_i32 = arith.constant 0 : i32
    %c0_i32_0 = arith.constant 0 : i32
    %c0_i32_1 = arith.constant 0 : i32
    return %arg0, %c0_i32, %c0_i32_0 : i32, i32, i32
  }
  func.func @transform_2(%arg0: i32) -> (i32, i32, i32) {
    %c0_i32 = arith.constant 0 : i32
    %c0_i32_0 = arith.constant 0 : i32
    %c0_i32_1 = arith.constant 0 : i32
    %c0_i32_2 = arith.constant 0 : i32
    return %c0_i32, %c0_i32_0, %c0_i32_1 : i32, i32, i32
  }
  func.func @transform_3(%arg0: i32) -> (i32, i32, i32) {
    %c0_i32 = arith.constant 0 : i32
    %c0_i32_0 = arith.constant 0 : i32
    %c0_i32_1 = arith.constant 0 : i32
    %c0_i32_2 = arith.constant 0 : i32
    return %c0_i32, %c0_i32_0, %c0_i32_1 : i32, i32, i32
  }
  func.func @transform_4(%arg0: i32) -> (i32, i32) {
    %c0_i32 = arith.constant 0 : i32
    %c0_i32_0 = arith.constant 0 : i32
    %c0_i32_1 = arith.constant 0 : i32
    return %c0_i32, %c0_i32_0 : i32, i32
  }
  func.func @transform_5(%arg0: i32) -> (i32, i32) {
    %c0_i32 = arith.constant 0 : i32
    %c0_i32_0 = arith.constant 0 : i32
    %c0_i32_1 = arith.constant 0 : i32
    return %c0_i32, %c0_i32_0 : i32, i32
  }
  func.func @transform_6(%arg0: i32) -> (i32, i32) {
    %c0_i32 = arith.constant 0 : i32
    %c0_i32_0 = arith.constant 0 : i32
    %c0_i32_1 = arith.constant 0 : i32
    return %c0_i32, %c0_i32_0 : i32, i32
  }
  func.func @transform_7(%arg0: i32) -> (i32, i32, i32) {
    %c0_i32 = arith.constant 0 : i32
    %c0_i32_0 = arith.constant 0 : i32
    %c0_i32_1 = arith.constant 0 : i32
    return %arg0, %c0_i32, %c0_i32_0 : i32, i32, i32
  }
  func.func @transform_8(%arg0: i32) -> (i32, i32, i32) {
    %c0_i32 = arith.constant 0 : i32
    %c0_i32_0 = arith.constant 0 : i32
    %c0_i32_1 = arith.constant 0 : i32
    return %arg0, %c0_i32, %c0_i32_0 : i32, i32, i32
  }
}

</mosaic_0001>

<llo_original>
// kernel: tpu_custom_call.1
$region0: #{tpu_custom_call.1}
  #allocation0 [shape = 'u32[]', space=smem, size = 0x4, offset = 0x4, fixed_abs, tag = 'smem constant byte address 0x4 - core index']
  #allocation1 [shape = 'u32[144,128]{1,0:T(1,128)}', space=vmem, size = 0x12000, scoped, tag = 'internal scratch']
  #allocation2 [shape = 'f32[40,128]{1,0:T(8,128)}', space=vmem, size = 0x5000, scoped, tag = 'scratch operand']
  %s0 = inlined_call_operand.hbm [shape: f32[80,128], index: 0, kind: input, shape index: {}]
  %s1 = inlined_call_operand.hbm [shape: f32[2,16,128], index: 1, kind: input, shape index: {}]
  %s2 = inlined_call_operand.hbm [shape: bf16[3,128,256], index: 2, kind: input, shape index: {}]
  %s3 = inlined_call_operand.hbm [shape: bf16[3,128,128], index: 3, kind: input, shape index: {}]
  %s4 = inlined_call_operand.vmem [shape: f32[1,128], index: 4, kind: input, shape index: {}]
  %s5 = inlined_call_operand.vmem [shape: f32[1,128], index: 5, kind: input, shape index: {}]
  %s6 = inlined_call_operand.vmem [shape: f32[1,128], index: 6, kind: input, shape index: {}]
  %s7 = inlined_call_operand.hbm [shape: f32[2,16,128], index: 7, kind: output, shape index: {0}]
  %s8 = inlined_call_operand.hbm [shape: f32[2,16,128], index: 8, kind: output, shape index: {1}]
  %9 = xla_tuple %s7, %s8
  %s10 = sld [smem:[#allocation0]]
  $region85: #{tpu_custom_call.1} parent=0
    _
  %s12 = ssub.s32 1, %s10
  %s13 = scalar_select 0, %s12, %s10
  $region1: #{tpu_custom_call.1} parent=0
    #allocation3 [shape = 'u8[40960]{0}', space=vmem, size = 0xa000, scoped, tag = 'input window, operand 0']
    #allocation4 [shape = 's32[2]{0}', space=sflag, size = 0x8, scoped, tag = 'scoped memory for tpu_custom_call.1']
    #allocation5 [shape = 's32[2]{0}', space=sflag, size = 0x8, scoped, tag = 'scoped memory for tpu_custom_call.1']
    #allocation6 [shape = 'u8[16384]{0}', space=vmem, size = 0x4000, scoped, tag = 'input window, operand 1']
    #allocation7 [shape = 's32[2]{0}', space=sflag, size = 0x8, scoped, tag = 'scoped memory for tpu_custom_call.1']
    #allocation8 [shape = 'u8[196608]{0}', space=vmem, size = 0x30000, scoped, tag = 'input window, operand 2, single buffered']
    #allocation9 [shape = 'u8[98304]{0}', space=vmem, size = 0x18000, scoped, tag = 'input window, operand 3, single buffered']
    #allocation10 [shape = 's32[1]{0}', space=sflag, size = 0x4, scoped, tag = 'scoped memory for tpu_custom_call.1']
    #allocation11 [shape = 'u8[16384]{0}', space=vmem, size = 0x4000, scoped, tag = 'output window, operand 0']
    #allocation12 [shape = 'u8[16384]{0}', space=vmem, size = 0x4000, scoped, tag = 'output window, operand 1']
    #allocation13 [shape = 's32[2]{0}', space=sflag, size = 0x8, scoped, tag = 'scoped memory for tpu_custom_call.1']
    %14 = vsyncpa [#allocation4], 0
    %s15 = scalar_lea.sflag [#allocation4], 1
    %16 = vsyncpa %s15, 0
    %17 = vsyncpa [#allocation7], 0
    %s18 = scalar_lea.sflag [#allocation7], 1
    %19 = vsyncpa %s18, 0
    %20 = vsyncpa [#allocation10], 0
    %21 = vsyncpa [#allocation5], 0
    %s22 = scalar_lea.sflag [#allocation5], 1
    %23 = vsyncpa %s22, 0
    %24 = vsyncpa [#allocation13], 0
    %s25 = scalar_lea.sflag [#allocation13], 1
    %26 = vsyncpa %s25, 0
    loop: start=0, step=1, limit=4
    $region2: #{tpu_custom_call.1} parent=1 // loop_pre_header
      _
    $region3: #{tpu_custom_call.1} parent=1 // loop_header
      %s28 = sphi 0, %s32
      %p29 = scmp.ge.s32.totalorder %s28, 4
      %s38 = sphi 0, %s40
      %s41 = sphi 0, %s38
      %s42 = sphi 0, %s41
      %s58 = sphi 0, %s42
      %s64 = sphi 0, %s66
      %s67 = sphi 0, %s64
      %s68 = sphi 0, %s67
      %s84 = sphi 0, %s68
      %s88 = sphi 0, %s88
      %s90 = sphi 0, %s88
      %s91 = sphi 0, %s90
      %s105 = sphi 0, %s91
      %s109 = sphi 0, %s109
      %s111 = sphi 0, %s109
      %s112 = sphi 0, %s111
      %s126 = sphi 0, %s112
      %s130 = sphi 0, %s130
      %s132 = sphi 0, %s130
      %s133 = sphi 0, %s132
      %s147 = sphi 0, %s133
      %s151 = sphi 0, %s151
      %s153 = sphi 0, %s151
      %s154 = sphi 0, %s153
      %s168 = sphi 0, %s154
      %s172 = sphi 0, %s172
      %s174 = sphi 0, %s172
      %s175 = sphi 0, %s174
      %s189 = sphi 0, %s175
      %s195 = sphi 0, %s197
      %s198 = sphi 0, %s195
      %s199 = sphi 0, %s198
      %s215 = sphi 0, %s199
      %s221 = sphi 0, %s223
      %s224 = sphi 0, %s221
      %s225 = sphi 0, %s224
      %s241 = sphi 0, %s225
    $region4: #{tpu_custom_call.1} parent=1 // loop_header_branch
      %31 = sbr.rel (%p29) target = $region8
    $region5: #{tpu_custom_call.1} parent=1 // loop_body
      %s33 = ssub.s32 %s28, 1
      %s34 = ssub.s32 %s28, 2
      %s35 = sadd.s32 %s28, 1
      %s36 = ssub.s32 %s28, %s35
      %p37 = scmp.eq.s32.totalorder %s36, 0
      %s39 = sadd.s32 %s38, 1
      %s40 = scalar_select %p37, %s38, %s39
      %p43 = pneg %p37
      %p44 = scmp.eq.s32.totalorder %s28, 1
      %p45 = por %p43, %p44
      %p46 = scmp.ne.s32.totalorder %s38, %s41
      %p47 = scmp.eq.s32.totalorder %s28, 0
      %p48 = por %p46, %p47
      %p49 = scmp.ne.s32.totalorder %s38, %s41
      %p50 = scmp.eq.s32.totalorder %s33, 1
      %p51 = por %p49, %p50
      %p52 = scmp.ne.s32.totalorder %s41, %s42
      %p53 = scmp.eq.s32.totalorder %s33, 0
      %p54 = por %p52, %p53
      %p55 = scmp.ne.s32.totalorder %s41, %s42
      %p56 = scmp.eq.s32.totalorder %s34, 1
      %p57 = por %p55, %p56
      %p59 = scmp.ne.s32.totalorder %s42, %s58
      %p60 = scmp.eq.s32.totalorder %s34, 0
      %p61 = por %p59, %p60
      %s62 = ssub.s32 %s28, %s35
      %p63 = scmp.eq.s32.totalorder %s62, 0
      %s65 = sadd.s32 %s64, 1
      %s66 = scalar_select %p63, %s64, %s65
      %p69 = pneg %p63
      %p70 = scmp.eq.s32.totalorder %s28, 1
      %p71 = por %p69, %p70
      %p72 = scmp.ne.s32.totalorder %s64, %s67
      %p73 = scmp.eq.s32.totalorder %s28, 0
      %p74 = por %p72, %p73
      %p75 = scmp.ne.s32.totalorder %s64, %s67
      %p76 = scmp.eq.s32.totalorder %s33, 1
      %p77 = por %p75, %p76
      %p78 = scmp.ne.s32.totalorder %s67, %s68
      %p79 = scmp.eq.s32.totalorder %s33, 0
      %p80 = por %p78, %p79
      %p81 = scmp.ne.s32.totalorder %s67, %s68
      %p82 = scmp.eq.s32.totalorder %s34, 1
      %p83 = por %p81, %p82
      %p85 = scmp.ne.s32.totalorder %s68, %s84
      %p86 = scmp.eq.s32.totalorder %s34, 0
      %p87 = por %p85, %p86
      %s89 = sadd.s32 %s88, 1
      %p92 = scmp.eq.s32.totalorder %s28, 1
      %p93 = scmp.ne.s32.totalorder %s88, %s90
      %p94 = scmp.eq.s32.totalorder %s28, 0
      %p95 = por %p93, %p94
      %p96 = scmp.ne.s32.totalorder %s88, %s90
      %p97 = scmp.eq.s32.totalorder %s33, 1
      %p98 = por %p96, %p97
      %p99 = scmp.ne.s32.totalorder %s90, %s91
      %p100 = scmp.eq.s32.totalorder %s33, 0
      %p101 = por %p99, %p100
      %p102 = scmp.ne.s32.totalorder %s90, %s91
      %p103 = scmp.eq.s32.totalorder %s34, 1
      %p104 = por %p102, %p103
      %p106 = scmp.ne.s32.totalorder %s91, %s105
      %p107 = scmp.eq.s32.totalorder %s34, 0
      %p108 = por %p106, %p107
      %s110 = sadd.s32 %s109, 1
      %p113 = scmp.eq.s32.totalorder %s28, 1
      %p114 = scmp.ne.s32.totalorder %s109, %s111
      %p115 = scmp.eq.s32.totalorder %s28, 0
      %p116 = por %p114, %p115
      %p117 = scmp.ne.s32.totalorder %s109, %s111
      %p118 = scmp.eq.s32.totalorder %s33, 1
      %p119 = por %p117, %p118
      %p120 = scmp.ne.s32.totalorder %s111, %s112
      %p121 = scmp.eq.s32.totalorder %s33, 0
      %p122 = por %p120, %p121
      %p123 = scmp.ne.s32.totalorder %s111, %s112
      %p124 = scmp.eq.s32.totalorder %s34, 1
      %p125 = por %p123, %p124
      %p127 = scmp.ne.s32.totalorder %s112, %s126
      %p128 = scmp.eq.s32.totalorder %s34, 0
      %p129 = por %p127, %p128
      %s131 = sadd.s32 %s130, 1
      %p134 = scmp.eq.s32.totalorder %s28, 1
      %p135 = scmp.ne.s32.totalorder %s130, %s132
      %p136 = scmp.eq.s32.totalorder %s28, 0
      %p137 = por %p135, %p136
      %p138 = scmp.ne.s32.totalorder %s130, %s132
      %p139 = scmp.eq.s32.totalorder %s33, 1
      %p140 = por %p138, %p139
      %p141 = scmp.ne.s32.totalorder %s132, %s133
      %p142 = scmp.eq.s32.totalorder %s33, 0
      %p143 = por %p141, %p142
      %p144 = scmp.ne.s32.totalorder %s132, %s133
      %p145 = scmp.eq.s32.totalorder %s34, 1
      %p146 = por %p144, %p145
      %p148 = scmp.ne.s32.totalorder %s133, %s147
      %p149 = scmp.eq.s32.totalorder %s34, 0
      %p150 = por %p148, %p149
      %s152 = sadd.s32 %s151, 1
      %p155 = scmp.eq.s32.totalorder %s28, 1
      %p156 = scmp.ne.s32.totalorder %s151, %s153
      %p157 = scmp.eq.s32.totalorder %s28, 0
      %p158 = por %p156, %p157
      %p159 = scmp.ne.s32.totalorder %s151, %s153
      %p160 = scmp.eq.s32.totalorder %s33, 1
      %p161 = por %p159, %p160
      %p162 = scmp.ne.s32.totalorder %s153, %s154
      %p163 = scmp.eq.s32.totalorder %s33, 0
      %p164 = por %p162, %p163
      %p165 = scmp.ne.s32.totalorder %s153, %s154
      %p166 = scmp.eq.s32.totalorder %s34, 1
      %p167 = por %p165, %p166
      %p169 = scmp.ne.s32.totalorder %s154, %s168
      %p170 = scmp.eq.s32.totalorder %s34, 0
      %p171 = por %p169, %p170
      %s173 = sadd.s32 %s172, 1
      %p176 = scmp.eq.s32.totalorder %s28, 1
      %p177 = scmp.ne.s32.totalorder %s172, %s174
      %p178 = scmp.eq.s32.totalorder %s28, 0
      %p179 = por %p177, %p178
      %p180 = scmp.ne.s32.totalorder %s172, %s174
      %p181 = scmp.eq.s32.totalorder %s33, 1
      %p182 = por %p180, %p181
      %p183 = scmp.ne.s32.totalorder %s174, %s175
      %p184 = scmp.eq.s32.totalorder %s33, 0
      %p185 = por %p183, %p184
      %p186 = scmp.ne.s32.totalorder %s174, %s175
      %p187 = scmp.eq.s32.totalorder %s34, 1
      %p188 = por %p186, %p187
      %p190 = scmp.ne.s32.totalorder %s175, %s189
      %p191 = scmp.eq.s32.totalorder %s34, 0
      %p192 = por %p190, %p191
      %s193 = ssub.s32 %s28, %s35
      %p194 = scmp.eq.s32.totalorder %s193, 0
      %s196 = sadd.s32 %s195, 1
      %s197 = scalar_select %p194, %s195, %s196
      %p200 = pneg %p194
      %p201 = scmp.eq.s32.totalorder %s28, 1
      %p202 = por %p200, %p201
      %p203 = scmp.ne.s32.totalorder %s195, %s198
      %p204 = scmp.eq.s32.totalorder %s28, 0
      %p205 = por %p203, %p204
      %p206 = scmp.ne.s32.totalorder %s195, %s198
      %p207 = scmp.eq.s32.totalorder %s33, 1
      %p208 = por %p206, %p207
      %p209 = scmp.ne.s32.totalorder %s198, %s199
      %p210 = scmp.eq.s32.totalorder %s33, 0
      %p211 = por %p209, %p210
      %p212 = scmp.ne.s32.totalorder %s198, %s199
      %p213 = scmp.eq.s32.totalorder %s34, 1
      %p214 = por %p212, %p213
      %p216 = scmp.ne.s32.totalorder %s199, %s215
      %p217 = scmp.eq.s32.totalorder %s34, 0
      %p218 = por %p216, %p217
      %s219 = ssub.s32 %s28, %s35
      %p220 = scmp.eq.s32.totalorder %s219, 0
      %s222 = sadd.s32 %s221, 1
      %s223 = scalar_select %p220, %s221, %s222
      %p226 = pneg %p220
      %p227 = scmp.eq.s32.totalorder %s28, 1
      %p228 = por %p226, %p227
      %p229 = scmp.ne.s32.totalorder %s221, %s224
      %p230 = scmp.eq.s32.totalorder %s28, 0
      %p231 = por %p229, %p230
      %p232 = scmp.ne.s32.totalorder %s221, %s224
      %p233 = scmp.eq.s32.totalorder %s33, 1
      %p234 = por %p232, %p233
      %p235 = scmp.ne.s32.totalorder %s224, %s225
      %p236 = scmp.eq.s32.totalorder %s33, 0
      %p237 = por %p235, %p236
      %p238 = scmp.ne.s32.totalorder %s224, %s225
      %p239 = scmp.eq.s32.totalorder %s34, 1
      %p240 = por %p238, %p239
      %p242 = scmp.ne.s32.totalorder %s225, %s241
      %p243 = scmp.eq.s32.totalorder %s34, 0
      %p244 = por %p242, %p243
      %p245 = scmp.le.s32.totalorder 1, %s28
      %p246 = scmp.lt.s32.totalorder %s28, 3
      %p247 = pnand %p245, %p246
      %p248 = pneg %p247
      // Predicated region
      $region9: #{tpu_custom_call.1} parent=5 // pred_check
        _
      $region10: #{tpu_custom_call.1} parent=5 // pred_check_branch
        %250 = sbr.rel (%p247) target = $region12
      $region11: #{tpu_custom_call.1} parent=5 // pred_region
        %s251 = ssub.s32 %s28, 1
        // Predicated region
        $region13: #{tpu_custom_call.1} parent=11 // pred_check
          %p252 = pneg %p101
        $region14: #{tpu_custom_call.1} parent=11 // pred_check_branch
          %254 = sbr.rel (%p252) target = $region16
        $region15: #{tpu_custom_call.1} parent=11 // pred_region
          %s256 = ssub.s32 6144, 6144
          %257 = vsyncadd [#allocation7], %s256
          %s258 = sshll.u32 [#allocation8], 4
          %s259 = int_to_ptr.vmem [resolvable:$true] %s258
          %264 = dma.hbm_to_vmem [thread:$0]  %s2, 6144, %s259, [#allocation7], 128, 128, 8
        $region16: #{tpu_custom_call.1} parent=11 // pred_fallthru
          _
        // Predicated region
        $region17: #{tpu_custom_call.1} parent=11 // pred_check
          %p265 = pneg %p122
        $region18: #{tpu_custom_call.1} parent=11 // pred_check_branch
          %267 = sbr.rel (%p265) target = $region20
        $region19: #{tpu_custom_call.1} parent=11 // pred_region
          %s269 = ssub.s32 3072, 3072
          %270 = vsyncadd [#allocation10], %s269
          %s271 = sshll.u32 [#allocation9], 4
          %s272 = int_to_ptr.vmem [resolvable:$true] %s271
          %277 = dma.hbm_to_vmem [thread:$0]  %s3, 3072, %s272, [#allocation10], 64, 64, 4
        $region20: #{tpu_custom_call.1} parent=11 // pred_fallthru
          _
        // Predicated region
        $region21: #{tpu_custom_call.1} parent=11 // pred_check
          %p278 = pneg %p143
        $region22: #{tpu_custom_call.1} parent=11 // pred_check_branch
          %280 = sbr.rel (%p278) target = $region24
        $region23: #{tpu_custom_call.1} parent=11 // pred_region
          _
        $region24: #{tpu_custom_call.1} parent=11 // pred_fallthru
          _
        // Predicated region
        $region25: #{tpu_custom_call.1} parent=11 // pred_check
          %p281 = pneg %p164
        $region26: #{tpu_custom_call.1} parent=11 // pred_check_branch
          %283 = sbr.rel (%p281) target = $region28
        $region27: #{tpu_custom_call.1} parent=11 // pred_region
          _
        $region28: #{tpu_custom_call.1} parent=11 // pred_fallthru
          _
        // Predicated region
        $region29: #{tpu_custom_call.1} parent=11 // pred_check
          %p284 = pneg %p185
        $region30: #{tpu_custom_call.1} parent=11 // pred_check_branch
          %286 = sbr.rel (%p284) target = $region32
        $region31: #{tpu_custom_call.1} parent=11 // pred_region
          _
        $region32: #{tpu_custom_call.1} parent=11 // pred_fallthru
          _
      $region12: #{tpu_custom_call.1} parent=5 // pred_fallthru
        _
      %p287 = scmp.lt.s32.totalorder %s28, 2
      // Predicated region
      $region33: #{tpu_custom_call.1} parent=5 // pred_check
        %p288 = pneg %p287
      $region34: #{tpu_custom_call.1} parent=5 // pred_check_branch
        %290 = sbr.rel (%p288) target = $region36
      $region35: #{tpu_custom_call.1} parent=5 // pred_region
        // Predicated region
        $region37: #{tpu_custom_call.1} parent=35 // pred_check
          %p291 = pneg %p48
        $region38: #{tpu_custom_call.1} parent=35 // pred_check_branch
          %293 = sbr.rel (%p291) target = $region40
        $region39: #{tpu_custom_call.1} parent=35 // pred_region
          %s294 = sand.u32 %s38, 1
          %s295 = scalar_lea.sflag [#allocation4], %s294
          %s296 = sand.u32 %s38, 1
          %s297 = smul.addr %s296, 40
          %s298 = scalar_lea.vmem [#allocation3], %s297
          %s299 = smul.u32 5, %s28
          %s301 = ssub.s32 640, 640
          %302 = vsyncadd %s295, %s301
          %s303 = smul.addr %s299, 128
          %s304 = scalar_lea.hbm %s0, %s303
          %s305 = sshll.u32 %s298, 4
          %s306 = int_to_ptr.vmem [resolvable:$true] %s305
          %311 = dma.hbm_to_vmem [thread:$0]  %s304, 640, %s306, %s295, 128, 128, 8
        $region40: #{tpu_custom_call.1} parent=35 // pred_fallthru
          _
        // Predicated region
        $region41: #{tpu_custom_call.1} parent=35 // pred_check
          %p312 = pneg %p74
        $region42: #{tpu_custom_call.1} parent=35 // pred_check_branch
          %314 = sbr.rel (%p312) target = $region44
        $region43: #{tpu_custom_call.1} parent=35 // pred_region
          %s315 = sand.u32 %s28, 1
          %s316 = scalar_lea.sflag [#allocation7], %s315
          %s317 = sand.u32 %s64, 1
          %s318 = smul.addr %s317, 16
          %s319 = scalar_lea.vmem [#allocation6], %s318
          %s321 = ssub.s32 256, 256
          %322 = vsyncadd %s316, %s321
          %s323 = smul.addr %s28, 2
          %s324 = smul.addr %s323, 128
          %s325 = scalar_lea.hbm %s1, %s324
          %s326 = sshll.u32 %s319, 4
          %s327 = int_to_ptr.vmem [resolvable:$true] %s326
          %332 = dma.hbm_to_vmem [thread:$0]  %s325, 256, %s327, %s316, 128, 128, 8
        $region44: #{tpu_custom_call.1} parent=35 // pred_fallthru
          _
      $region36: #{tpu_custom_call.1} parent=5 // pred_fallthru
        _
      %p333 = scmp.le.s32.totalorder 1, %s28
      %p334 = scmp.lt.s32.totalorder %s28, 3
      %p335 = pnand %p333, %p334
      %p336 = pneg %p335
      // Predicated region
      $region45: #{tpu_custom_call.1} parent=5 // pred_check
        _
      $region46: #{tpu_custom_call.1} parent=5 // pred_check_branch
        %338 = sbr.rel (%p335) target = $region48
      $region47: #{tpu_custom_call.1} parent=5 // pred_region
        %s339 = ssub.s32 %s28, 1
        %s340 = sand.u32 %s41, 1
        %s341 = scalar_lea.sflag [#allocation4], %s340
        %s342 = sand.u32 %s41, 1
        %s343 = smul.addr %s342, 40
        %s344 = scalar_lea.vmem [#allocation3], %s343
        // Predicated region
        $region49: #{tpu_custom_call.1} parent=47 // pred_check
          %p345 = pneg %p54
        $region50: #{tpu_custom_call.1} parent=47 // pred_check_branch
          %347 = sbr.rel (%p345) target = $region52
        $region51: #{tpu_custom_call.1} parent=47 // pred_region
          %348 = dma.done %s341, 640
        $region52: #{tpu_custom_call.1} parent=47 // pred_fallthru
          _
        %s349 = sand.u32 %s33, 1
        %s350 = scalar_lea.sflag [#allocation7], %s349
        %s351 = sand.u32 %s67, 1
        %s352 = smul.addr %s351, 16
        %s353 = scalar_lea.vmem [#allocation6], %s352
        // Predicated region
        $region53: #{tpu_custom_call.1} parent=47 // pred_check
          %p354 = pneg %p80
        $region54: #{tpu_custom_call.1} parent=47 // pred_check_branch
          %356 = sbr.rel (%p354) target = $region56
        $region55: #{tpu_custom_call.1} parent=47 // pred_region
          %357 = dma.done %s350, 256
        $region56: #{tpu_custom_call.1} parent=47 // pred_fallthru
          _
        // Predicated region
        $region57: #{tpu_custom_call.1} parent=47 // pred_check
          %p358 = pneg %p101
        $region58: #{tpu_custom_call.1} parent=47 // pred_check_branch
          %360 = sbr.rel (%p358) target = $region60
        $region59: #{tpu_custom_call.1} parent=47 // pred_region
          %361 = dma.done [#allocation7], 6144
        $region60: #{tpu_custom_call.1} parent=47 // pred_fallthru
          _
        // Predicated region
        $region61: #{tpu_custom_call.1} parent=47 // pred_check
          %p362 = pneg %p122
        $region62: #{tpu_custom_call.1} parent=47 // pred_check_branch
          %364 = sbr.rel (%p362) target = $region64
        $region63: #{tpu_custom_call.1} parent=47 // pred_region
          %365 = dma.done [#allocation10], 3072
        $region64: #{tpu_custom_call.1} parent=47 // pred_fallthru
          _
        %s366 = sand.u32 %s41, 1
        %s367 = scalar_lea.sflag [#allocation4], %s366
        %s368 = sand.u32 %s41, 1
        %s369 = smul.addr %s368, 40
        %s370 = scalar_lea.vmem [#allocation3], %s369
        %p371 = pneg %p54
        %p372 = pneg %p51
        %s373 = sand.u32 %s33, 1
        %s374 = scalar_lea.sflag [#allocation7], %s373
        %s375 = sand.u32 %s67, 1
        %s376 = smul.addr %s375, 16
        %s377 = scalar_lea.vmem [#allocation6], %s376
        %p378 = pneg %p80
        %p379 = pneg %p77
        %p380 = pneg %p101
        %p381 = pneg %p98
        %p382 = pneg %p122
        %p383 = pneg %p119
        %p384 = pneg %p143
        %p385 = pneg %p140
        %p386 = pneg %p164
        %p387 = pneg %p161
        %p388 = pneg %p185
        %p389 = pneg %p182
        %p390 = pneg %p211
        %p391 = pneg %p208
        %s392 = sand.u32 %s198, 1
        %s393 = scalar_lea.sflag [#allocation5], %s392
        %s394 = sand.u32 %s198, 1
        %s395 = smul.addr %s394, 16
        %s396 = scalar_lea.vmem [#allocation11], %s395
        %p397 = pneg %p237
        %p398 = pneg %p234
        %s399 = sand.u32 %s224, 1
        %s400 = scalar_lea.sflag [#allocation13], %s399
        %s401 = sand.u32 %s224, 1
        %s402 = smul.addr %s401, 16
        %s403 = scalar_lea.vmem [#allocation12], %s402
        %s404 = smul.u32 5, %s33
        %v406 = vld [vmem:[%s344 + $0x7] sm:$0xff]
        %v407 = vld [vmem:[%s344 + $0xf] sm:$0xff]
        %v408 = vld [vmem:[%s344 + $0x17] sm:$0xff]
        %v409 = vpack.c.bf16 %v407, %v406
        %v410 = vpack.c.bf16 %v408, %v408
        %v411 = vld [vmem:[#allocation8] sm:$0xff]
        %v412 = vld [vmem:[#allocation8 + $0x8] sm:$0xff]
        %v413 = vld [vmem:[#allocation8 + $0x10] sm:$0xff]
        %v414 = vld [vmem:[#allocation8 + $0x18] sm:$0xff]
        %v415 = vld [vmem:[#allocation8 + $0x20] sm:$0xff]
        %v416 = vld [vmem:[#allocation8 + $0x28] sm:$0xff]
        %v417 = vld [vmem:[#allocation8 + $0x30] sm:$0xff]
        %v418 = vld [vmem:[#allocation8 + $0x38] sm:$0xff]
        %v419 = vld [vmem:[#allocation8 + $0x40] sm:$0xff]
        %v420 = vld [vmem:[#allocation8 + $0x48] sm:$0xff]
        %v421 = vld [vmem:[#allocation8 + $0x50] sm:$0xff]
        %v422 = vld [vmem:[#allocation8 + $0x58] sm:$0xff]
        %v423 = vld [vmem:[#allocation8 + $0x60] sm:$0xff]
        %v424 = vld [vmem:[#allocation8 + $0x68] sm:$0xff]
        %v425 = vld [vmem:[#allocation8 + $0x70] sm:$0xff]
        %v426 = vld [vmem:[#allocation8 + $0x78] sm:$0xff]
        %v427 = vld [vmem:[%s344 + $0x8] sm:$0xff]
        %v428 = vld [vmem:[%s344 + $0x10] sm:$0xff]
        %v429 = vld [vmem:[%s344 + $0x18] sm:$0xff]
        %v430 = vpack.c.bf16 %v428, %v427
        %v431 = vpack.c.bf16 %v429, %v429
        %s432 = scalar_lea.vmem [#allocation8], 128
        %v433 = vld [vmem:[%s432] sm:$0xff]
        %v434 = vld [vmem:[%s432 + $0x8] sm:$0xff]
        %v435 = vld [vmem:[%s432 + $0x10] sm:$0xff]
        %v436 = vld [vmem:[%s432 + $0x18] sm:$0xff]
        %v437 = vld [vmem:[%s432 + $0x20] sm:$0xff]
        %v438 = vld [vmem:[%s432 + $0x28] sm:$0xff]
        %v439 = vld [vmem:[%s432 + $0x30] sm:$0xff]
        %v440 = vld [vmem:[%s432 + $0x38] sm:$0xff]
        %v441 = vld [vmem:[%s432 + $0x40] sm:$0xff]
        %v442 = vld [vmem:[%s432 + $0x48] sm:$0xff]
        %v443 = vld [vmem:[%s432 + $0x50] sm:$0xff]
        %v444 = vld [vmem:[%s432 + $0x58] sm:$0xff]
        %v445 = vld [vmem:[%s432 + $0x60] sm:$0xff]
        %v446 = vld [vmem:[%s432 + $0x68] sm:$0xff]
        %v447 = vld [vmem:[%s432 + $0x70] sm:$0xff]
        %v448 = vld [vmem:[%s432 + $0x78] sm:$0xff]
        %v465 = vunpack.c.l.b16 %v433
        %v466 = vunpack.c.h.b16 %v433
        %v467 = vunpack.c.l.b16 %v434
        %v468 = vunpack.c.h.b16 %v434
        %v469 = vunpack.c.l.b16 %v435
        %v470 = vunpack.c.h.b16 %v435
        %v471 = vunpack.c.l.b16 %v436
        %v472 = vunpack.c.h.b16 %v436
        %v473 = vunpack.c.l.b16 %v437
        %v474 = vunpack.c.h.b16 %v437
        %v475 = vunpack.c.l.b16 %v438
        %v476 = vunpack.c.h.b16 %v438
        %v477 = vunpack.c.l.b16 %v439
        %v478 = vunpack.c.h.b16 %v439
        %v479 = vunpack.c.l.b16 %v440
        %v480 = vunpack.c.h.b16 %v440
        %v481 = vunpack.c.l.b16 %v441
        %v482 = vunpack.c.h.b16 %v441
        %v483 = vunpack.c.l.b16 %v442
        %v484 = vunpack.c.h.b16 %v442
        %v485 = vunpack.c.l.b16 %v443
        %v486 = vunpack.c.h.b16 %v443
        %v487 = vunpack.c.l.b16 %v444
        %v488 = vunpack.c.h.b16 %v444
        %v489 = vunpack.c.l.b16 %v445
        %v490 = vunpack.c.h.b16 %v445
        %v491 = vunpack.c.l.b16 %v446
        %v492 = vunpack.c.h.b16 %v446
        %v493 = vunpack.c.l.b16 %v447
        %v494 = vunpack.c.h.b16 %v447
        %v495 = vunpack.c.l.b16 %v448
        %v496 = vunpack.c.h.b16 %v448
        %v497 = vpack.c.b16 %v467, %v465
        %v498 = vpack.c.b16 %v468, %v466
        %v499 = vpack.c.b16 %v471, %v469
        %v500 = vpack.c.b16 %v472, %v470
        %v501 = vpack.c.b16 %v475, %v473
        %v502 = vpack.c.b16 %v476, %v474
        %v503 = vpack.c.b16 %v479, %v477
        %v504 = vpack.c.b16 %v480, %v478
        %v505 = vpack.c.b16 %v483, %v481
        %v506 = vpack.c.b16 %v484, %v482
        %v507 = vpack.c.b16 %v487, %v485
        %v508 = vpack.c.b16 %v488, %v486
        %v509 = vpack.c.b16 %v491, %v489
        %v510 = vpack.c.b16 %v492, %v490
        %v511 = vpack.c.b16 %v495, %v493
        %v512 = vpack.c.b16 %v496, %v494
        %529 = vmatprep.subr.bf16.mxu0 %v498
        %530 = vmatpush1.bf16.msra.mxu0 %v497
        %531 = vmatprep.subr.bf16.mxu0 %v500
        %532 = vmatpush1.bf16.msra.mxu0 %v499
        %533 = vmatprep.subr.bf16.mxu0 %v502
        %534 = vmatpush1.bf16.msra.mxu0 %v501
        %535 = vmatprep.subr.bf16.mxu0 %v504
        %536 = vmatpush1.bf16.msra.mxu0 %v503
        %537 = vmatprep.subr.bf16.mxu0 %v506
        %538 = vmatpush1.bf16.msra.mxu0 %v505
        %539 = vmatprep.subr.bf16.mxu0 %v508
        %540 = vmatpush1.bf16.msra.mxu0 %v507
        %541 = vmatprep.subr.bf16.mxu0 %v510
        %542 = vmatpush1.bf16.msra.mxu0 %v509
        %543 = vmatprep.subr.bf16.mxu0 %v512
        %544 = vmatpush1.bf16.msra.mxu0 %v511
        %545 = vmatprep.subr.bf16.mxu0 0
        %546 = vmatpush1.bf16.msra.mxu0 0
        %547 = vmatprep.subr.bf16.mxu0 0
        %548 = vmatpush1.bf16.msra.mxu0 0
        %549 = vmatprep.subr.bf16.mxu0 0
        %550 = vmatpush1.bf16.msra.mxu0 0
        %551 = vmatprep.subr.bf16.mxu0 0
        %552 = vmatpush1.bf16.msra.mxu0 0
        %553 = vmatprep.subr.bf16.mxu0 0
        %554 = vmatpush1.bf16.msra.mxu0 0
        %555 = vmatprep.subr.bf16.mxu0 0
        %556 = vmatpush1.bf16.msra.mxu0 0
        %557 = vmatprep.subr.bf16.mxu0 0
        %558 = vmatpush1.bf16.msra.mxu0 0
        %559 = vmatprep.subr.bf16.mxu0 0
        %560 = vmatpush1.bf16.msra.mxu0 0
        %561 = vmatprep.mubr.bf16.mxu0 0
        %562 = vmatmul.mubr.bf16.gmra.mrb[0].mxu0 %v430
        %v563 = vpop.f32.mrb[0].mxu0
        %v564 = vadd.f32 0.0, %v563
        %v565 = vpop.f32.mrb[0].mxu0
        %v566 = vadd.f32 0.0, %v565
        %v567 = vpop.f32.mrb[0].mxu0
        %v568 = vadd.f32 0.0, %v567
        %v569 = vpop.f32.mrb[0].mxu0
        %v570 = vadd.f32 0.0, %v569
        %571 = vmatprep.mubr.bf16.mxu0 0
        %572 = vmatmul.mubr.bf16.gmra.mrb[0].mxu0 %v431
        %v573 = vpop.f32.mrb[0].mxu0
        %v574 = vpop.f32.mrb[0].mxu0
        %v575 = vpop.f32.mrb[0].mxu0
        %v576 = vpop.f32.mrb[0].mxu0
        %577 = vdwg.mxu0
        %v594 = vunpack.c.l.b16 %v411
        %v595 = vunpack.c.h.b16 %v411
        %v596 = vunpack.c.l.b16 %v412
        %v597 = vunpack.c.h.b16 %v412
        %v598 = vunpack.c.l.b16 %v413
        %v599 = vunpack.c.h.b16 %v413
        %v600 = vunpack.c.l.b16 %v414
        %v601 = vunpack.c.h.b16 %v414
        %v602 = vunpack.c.l.b16 %v415
        %v603 = vunpack.c.h.b16 %v415
        %v604 = vunpack.c.l.b16 %v416
        %v605 = vunpack.c.h.b16 %v416
        %v606 = vunpack.c.l.b16 %v417
        %v607 = vunpack.c.h.b16 %v417
        %v608 = vunpack.c.l.b16 %v418
        %v609 = vunpack.c.h.b16 %v418
        %v610 = vunpack.c.l.b16 %v419
        %v611 = vunpack.c.h.b16 %v419
        %v612 = vunpack.c.l.b16 %v420
        %v613 = vunpack.c.h.b16 %v420
        %v614 = vunpack.c.l.b16 %v421
        %v615 = vunpack.c.h.b16 %v421
        %v616 = vunpack.c.l.b16 %v422
        %v617 = vunpack.c.h.b16 %v422
        %v618 = vunpack.c.l.b16 %v423
        %v619 = vunpack.c.h.b16 %v423
        %v620 = vunpack.c.l.b16 %v424
        %v621 = vunpack.c.h.b16 %v424
        %v622 = vunpack.c.l.b16 %v425
        %v623 = vunpack.c.h.b16 %v425
        %v624 = vunpack.c.l.b16 %v426
        %v625 = vunpack.c.h.b16 %v426
        %v626 = vpack.c.b16 %v596, %v594
        %v627 = vpack.c.b16 %v597, %v595
        %v628 = vpack.c.b16 %v600, %v598
        %v629 = vpack.c.b16 %v601, %v599
        %v630 = vpack.c.b16 %v604, %v602
        %v631 = vpack.c.b16 %v605, %v603
        %v632 = vpack.c.b16 %v608, %v606
        %v633 = vpack.c.b16 %v609, %v607
        %v634 = vpack.c.b16 %v612, %v610
        %v635 = vpack.c.b16 %v613, %v611
        %v636 = vpack.c.b16 %v616, %v614
        %v637 = vpack.c.b16 %v617, %v615
        %v638 = vpack.c.b16 %v620, %v618
        %v639 = vpack.c.b16 %v621, %v619
        %v640 = vpack.c.b16 %v624, %v622
        %v641 = vpack.c.b16 %v625, %v623
        %658 = vmatprep.subr.bf16.mxu0 %v627
        %659 = vmatpush1.bf16.msra.mxu0 %v626
        %660 = vmatprep.subr.bf16.mxu0 %v629
        %661 = vmatpush1.bf16.msra.mxu0 %v628
        %662 = vmatprep.subr.bf16.mxu0 %v631
        %663 = vmatpush1.bf16.msra.mxu0 %v630
        %664 = vmatprep.subr.bf16.mxu0 %v633
        %665 = vmatpush1.bf16.msra.mxu0 %v632
        %666 = vmatprep.subr.bf16.mxu0 %v635
        %667 = vmatpush1.bf16.msra.mxu0 %v634
        %668 = vmatprep.subr.bf16.mxu0 %v637
        %669 = vmatpush1.bf16.msra.mxu0 %v636
        %670 = vmatprep.subr.bf16.mxu0 %v639
        %671 = vmatpush1.bf16.msra.mxu0 %v638
        %672 = vmatprep.subr.bf16.mxu0 %v641
        %673 = vmatpush1.bf16.msra.mxu0 %v640
        %674 = vmatprep.subr.bf16.mxu0 0
        %675 = vmatpush1.bf16.msra.mxu0 0
        %676 = vmatprep.subr.bf16.mxu0 0
        %677 = vmatpush1.bf16.msra.mxu0 0
        %678 = vmatprep.subr.bf16.mxu0 0
        %679 = vmatpush1.bf16.msra.mxu0 0
        %680 = vmatprep.subr.bf16.mxu0 0
        %681 = vmatpush1.bf16.msra.mxu0 0
        %682 = vmatprep.subr.bf16.mxu0 0
        %683 = vmatpush1.bf16.msra.mxu0 0
        %684 = vmatprep.subr.bf16.mxu0 0
        %685 = vmatpush1.bf16.msra.mxu0 0
        %686 = vmatprep.subr.bf16.mxu0 0
        %687 = vmatpush1.bf16.msra.mxu0 0
        %688 = vmatprep.subr.bf16.mxu0 0
        %689 = vmatpush1.bf16.msra.mxu0 0
        %690 = vmatprep.mubr.bf16.mxu0 0
        %691 = vmatmul.mubr.bf16.gmra.mrb[0].mxu0 %v409
        %v692 = vpop.f32.mrb[0].mxu0
        %v693 = vadd.f32 %v564, %v692
        %v694 = vpop.f32.mrb[0].mxu0
        %v695 = vadd.f32 %v566, %v694
        %v696 = vpop.f32.mrb[0].mxu0
        %v697 = vadd.f32 %v568, %v696
        %v698 = vpop.f32.mrb[0].mxu0
        %v699 = vadd.f32 %v570, %v698
        %700 = vmatprep.mubr.bf16.mxu0 0
        %701 = vmatmul.mubr.bf16.gmra.mrb[0].mxu0 %v410
        %v702 = vpop.f32.mrb[0].mxu0
        %v703 = vpop.f32.mrb[0].mxu0
        %v704 = vpop.f32.mrb[0].mxu0
        %v705 = vpop.f32.mrb[0].mxu0
        %706 = vdwg.mxu0
        %v707 = vld [vmem:[%s344 + $0x9] sm:$0xff]
        %v708 = vld [vmem:[%s344 + $0x11] sm:$0xff]
        %v709 = vld [vmem:[%s344 + $0x19] sm:$0xff]
        %v710 = vpack.c.bf16 %v708, %v707
        %v711 = vpack.c.bf16 %v709, %v709
        %s712 = scalar_lea.vmem [#allocation8], 256
        %v713 = vld [vmem:[%s712] sm:$0xff]
        %v714 = vld [vmem:[%s712 + $0x8] sm:$0xff]
        %v715 = vld [vmem:[%s712 + $0x10] sm:$0xff]
        %v716 = vld [vmem:[%s712 + $0x18] sm:$0xff]
        %v717 = vld [vmem:[%s712 + $0x20] sm:$0xff]
        %v718 = vld [vmem:[%s712 + $0x28] sm:$0xff]
        %v719 = vld [vmem:[%s712 + $0x30] sm:$0xff]
        %v720 = vld [vmem:[%s712 + $0x38] sm:$0xff]
        %v721 = vld [vmem:[%s712 + $0x40] sm:$0xff]
        %v722 = vld [vmem:[%s712 + $0x48] sm:$0xff]
        %v723 = vld [vmem:[%s712 + $0x50] sm:$0xff]
        %v724 = vld [vmem:[%s712 + $0x58] sm:$0xff]
        %v725 = vld [vmem:[%s712 + $0x60] sm:$0xff]
        %v726 = vld [vmem:[%s712 + $0x68] sm:$0xff]
        %v727 = vld [vmem:[%s712 + $0x70] sm:$0xff]
        %v728 = vld [vmem:[%s712 + $0x78] sm:$0xff]
        %v745 = vunpack.c.l.b16 %v713
        %v746 = vunpack.c.h.b16 %v713
        %v747 = vunpack.c.l.b16 %v714
        %v748 = vunpack.c.h.b16 %v714
        %v749 = vunpack.c.l.b16 %v715
        %v750 = vunpack.c.h.b16 %v715
        %v751 = vunpack.c.l.b16 %v716
        %v752 = vunpack.c.h.b16 %v716
        %v753 = vunpack.c.l.b16 %v717
        %v754 = vunpack.c.h.b16 %v717
        %v755 = vunpack.c.l.b16 %v718
        %v756 = vunpack.c.h.b16 %v718
        %v757 = vunpack.c.l.b16 %v719
        %v758 = vunpack.c.h.b16 %v719
        %v759 = vunpack.c.l.b16 %v720
        %v760 = vunpack.c.h.b16 %v720
        %v761 = vunpack.c.l.b16 %v721
        %v762 = vunpack.c.h.b16 %v721
        %v763 = vunpack.c.l.b16 %v722
        %v764 = vunpack.c.h.b16 %v722
        %v765 = vunpack.c.l.b16 %v723
        %v766 = vunpack.c.h.b16 %v723
        %v767 = vunpack.c.l.b16 %v724
        %v768 = vunpack.c.h.b16 %v724
        %v769 = vunpack.c.l.b16 %v725
        %v770 = vunpack.c.h.b16 %v725
        %v771 = vunpack.c.l.b16 %v726
        %v772 = vunpack.c.h.b16 %v726
        %v773 = vunpack.c.l.b16 %v727
        %v774 = vunpack.c.h.b16 %v727
        %v775 = vunpack.c.l.b16 %v728
        %v776 = vunpack.c.h.b16 %v728
        %v777 = vpack.c.b16 %v747, %v745
        %v778 = vpack.c.b16 %v748, %v746
        %v779 = vpack.c.b16 %v751, %v749
        %v780 = vpack.c.b16 %v752, %v750
        %v781 = vpack.c.b16 %v755, %v753
        %v782 = vpack.c.b16 %v756, %v754
        %v783 = vpack.c.b16 %v759, %v757
        %v784 = vpack.c.b16 %v760, %v758
        %v785 = vpack.c.b16 %v763, %v761
        %v786 = vpack.c.b16 %v764, %v762
        %v787 = vpack.c.b16 %v767, %v765
        %v788 = vpack.c.b16 %v768, %v766
        %v789 = vpack.c.b16 %v771, %v769
        %v790 = vpack.c.b16 %v772, %v770
        %v791 = vpack.c.b16 %v775, %v773
        %v792 = vpack.c.b16 %v776, %v774
        %809 = vmatprep.subr.bf16.mxu0 %v778
        %810 = vmatpush1.bf16.msra.mxu0 %v777
        %811 = vmatprep.subr.bf16.mxu0 %v780
        %812 = vmatpush1.bf16.msra.mxu0 %v779
        %813 = vmatprep.subr.bf16.mxu0 %v782
        %814 = vmatpush1.bf16.msra.mxu0 %v781
        %815 = vmatprep.subr.bf16.mxu0 %v784
        %816 = vmatpush1.bf16.msra.mxu0 %v783
        %817 = vmatprep.subr.bf16.mxu0 %v786
        %818 = vmatpush1.bf16.msra.mxu0 %v785
        %819 = vmatprep.subr.bf16.mxu0 %v788
        %820 = vmatpush1.bf16.msra.mxu0 %v787
        %821 = vmatprep.subr.bf16.mxu0 %v790
        %822 = vmatpush1.bf16.msra.mxu0 %v789
        %823 = vmatprep.subr.bf16.mxu0 %v792
        %824 = vmatpush1.bf16.msra.mxu0 %v791
        %825 = vmatprep.subr.bf16.mxu0 0
        %826 = vmatpush1.bf16.msra.mxu0 0
        %827 = vmatprep.subr.bf16.mxu0 0
        %828 = vmatpush1.bf16.msra.mxu0 0
        %829 = vmatprep.subr.bf16.mxu0 0
        %830 = vmatpush1.bf16.msra.mxu0 0
        %831 = vmatprep.subr.bf16.mxu0 0
        %832 = vmatpush1.bf16.msra.mxu0 0
        %833 = vmatprep.subr.bf16.mxu0 0
        %834 = vmatpush1.bf16.msra.mxu0 0
        %835 = vmatprep.subr.bf16.mxu0 0
        %836 = vmatpush1.bf16.msra.mxu0 0
        %837 = vmatprep.subr.bf16.mxu0 0
        %838 = vmatpush1.bf16.msra.mxu0 0
        %839 = vmatprep.subr.bf16.mxu0 0
        %840 = vmatpush1.bf16.msra.mxu0 0
        %841 = vmatprep.mubr.bf16.mxu0 0
        %842 = vmatmul.mubr.bf16.gmra.mrb[0].mxu0 %v710
        %v843 = vpop.f32.mrb[0].mxu0
        %v844 = vadd.f32 0.0, %v843
        %v845 = vpop.f32.mrb[0].mxu0
        %v846 = vadd.f32 0.0, %v845
        %v847 = vpop.f32.mrb[0].mxu0
        %v848 = vadd.f32 0.0, %v847
        %v849 = vpop.f32.mrb[0].mxu0
        %v850 = vadd.f32 0.0, %v849
        %851 = vmatprep.mubr.bf16.mxu0 0
        %852 = vmatmul.mubr.bf16.gmra.mrb[0].mxu0 %v711
        %v853 = vpop.f32.mrb[0].mxu0
        %v854 = vpop.f32.mrb[0].mxu0
        %v855 = vpop.f32.mrb[0].mxu0
        %v856 = vpop.f32.mrb[0].mxu0
        %857 = vdwg.mxu0
        %v858 = vadd.f32 %v693, %v844
        %v859 = vadd.f32 %v695, %v846
        %v860 = vadd.f32 %v697, %v848
        %v861 = vadd.f32 %v699, %v850
        %v862 = vld [vmem:[%s4] sm:$0x1]
        %v864 = vlaneseq
        %v865 = vshrl.u32 %v864, 7
        %v866 = vsub.s32 0, %v865
        %v867 = vrot.slane %v862, %v866
        %v869 = vadd.f32 %v858, %v867
        %v870 = vadd.f32 %v860, %v867
        %v871 = vld [vmem:[%s5] sm:$0x1]
        %v873 = vlaneseq
        %v874 = vshrl.u32 %v873, 7
        %v875 = vsub.s32 0, %v874
        %v876 = vrot.slane %v871, %v875
        %v878 = vadd.f32 %v859, %v876
        %v879 = vadd.f32 %v861, %v876
        %880 = vst [vmem:[#allocation2] sm:$0xff] 0.0
        %881 = vst [vmem:[#allocation2 + $0x8] sm:$0xff] 0.0
        %882 = vst [vmem:[#allocation2 + $0x10] sm:$0xff] 0.0
        %883 = vst [vmem:[#allocation2 + $0x18] sm:$0xff] 0.0
        %884 = vst [vmem:[#allocation2 + $0x20] sm:$0xff] 0.0
        %v885 = vld [vmem:[%s353] sm:$0xff]
        %v886 = vld [vmem:[%s353 + $0x8] sm:$0xff]
        %v887 = vadd.f32 %v878, %v885
        %v888 = vadd.f32 %v879, %v886
        %889 = vst [vmem:[%s403] sm:$0xff] %v887
        %890 = vst [vmem:[%s403 + $0x8] sm:$0xff] %v888
        %891 = vst [vmem:[#allocation2 + $0x8] sm:$0xff] %v887
        %892 = vst [vmem:[#allocation2 + $0x10] sm:$0xff] %v888
        %v893 = vld [vmem:[#allocation2 + $0x7] sm:$0xff]
        %v894 = vld [vmem:[#allocation2 + $0xf] sm:$0xff]
        %v895 = vld [vmem:[#allocation2 + $0x17] sm:$0xff]
        %v896 = vpack.c.bf16 %v894, %v893
        %v897 = vpack.c.bf16 %v895, %v895
        %v898 = vld [vmem:[#allocation9] sm:$0xf]
        %v899 = vld [vmem:[#allocation9 + $0x4] sm:$0xf]
        %v900 = vld [vmem:[#allocation9 + $0x8] sm:$0xf]
        %v901 = vld [vmem:[#allocation9 + $0xc] sm:$0xf]
        %v902 = vld [vmem:[#allocation9 + $0x10] sm:$0xf]
        %v903 = vld [vmem:[#allocation9 + $0x14] sm:$0xf]
        %v904 = vld [vmem:[#allocation9 + $0x18] sm:$0xf]
        %v905 = vld [vmem:[#allocation9 + $0x1c] sm:$0xf]
        %v906 = vld [vmem:[#allocation9 + $0x20] sm:$0xf]
        %v907 = vld [vmem:[#allocation9 + $0x24] sm:$0xf]
        %v908 = vld [vmem:[#allocation9 + $0x28] sm:$0xf]
        %v909 = vld [vmem:[#allocation9 + $0x2c] sm:$0xf]
        %v910 = vld [vmem:[#allocation9 + $0x30] sm:$0xf]
        %v911 = vld [vmem:[#allocation9 + $0x34] sm:$0xf]
        %v912 = vld [vmem:[#allocation9 + $0x38] sm:$0xf]
        %v913 = vld [vmem:[#allocation9 + $0x3c] sm:$0xf]
        %v914 = vld [vmem:[#allocation2 + $0x8] sm:$0xff]
        %v915 = vld [vmem:[#allocation2 + $0x10] sm:$0xff]
        %v916 = vld [vmem:[#allocation2 + $0x18] sm:$0xff]
        %v917 = vpack.c.bf16 %v915, %v914
        %v918 = vpack.c.bf16 %v916, %v916
        %s919 = scalar_lea.vmem [#allocation9], 64
        %v920 = vld [vmem:[%s919] sm:$0xf]
        %v921 = vld [vmem:[%s919 + $0x4] sm:$0xf]
        %v922 = vld [vmem:[%s919 + $0x8] sm:$0xf]
        %v923 = vld [vmem:[%s919 + $0xc] sm:$0xf]
        %v924 = vld [vmem:[%s919 + $0x10] sm:$0xf]
        %v925 = vld [vmem:[%s919 + $0x14] sm:$0xf]
        %v926 = vld [vmem:[%s919 + $0x18] sm:$0xf]
        %v927 = vld [vmem:[%s919 + $0x1c] sm:$0xf]
        %v928 = vld [vmem:[%s919 + $0x20] sm:$0xf]
        %v929 = vld [vmem:[%s919 + $0x24] sm:$0xf]
        %v930 = vld [vmem:[%s919 + $0x28] sm:$0xf]
        %v931 = vld [vmem:[%s919 + $0x2c] sm:$0xf]
        %v932 = vld [vmem:[%s919 + $0x30] sm:$0xf]
        %v933 = vld [vmem:[%s919 + $0x34] sm:$0xf]
        %v934 = vld [vmem:[%s919 + $0x38] sm:$0xf]
        %v935 = vld [vmem:[%s919 + $0x3c] sm:$0xf]
        %v952 = vunpack.c.l.b16 %v920
        %v953 = vunpack.c.l.b16 %v921
        %v954 = vunpack.c.l.b16 %v922
        %v955 = vunpack.c.l.b16 %v923
        %v956 = vunpack.c.l.b16 %v924
        %v957 = vunpack.c.l.b16 %v925
        %v958 = vunpack.c.l.b16 %v926
        %v959 = vunpack.c.l.b16 %v927
        %v960 = vunpack.c.l.b16 %v928
        %v961 = vunpack.c.l.b16 %v929
        %v962 = vunpack.c.l.b16 %v930
        %v963 = vunpack.c.l.b16 %v931
        %v964 = vunpack.c.l.b16 %v932
        %v965 = vunpack.c.l.b16 %v933
        %v966 = vunpack.c.l.b16 %v934
        %v967 = vunpack.c.l.b16 %v935
        %v968 = vpack.c.b16 %v953, %v952
        %v969 = vpack.c.b16 %v955, %v954
        %v970 = vpack.c.b16 %v957, %v956
        %v971 = vpack.c.b16 %v959, %v958
        %v972 = vpack.c.b16 %v961, %v960
        %v973 = vpack.c.b16 %v963, %v962
        %v974 = vpack.c.b16 %v965, %v964
        %v975 = vpack.c.b16 %v967, %v966
        %984 = vmatprep.subr.bf16.mxu0 0
        %985 = vmatpush1.bf16.msra.mxu0 %v968
        %986 = vmatprep.subr.bf16.mxu0 0
        %987 = vmatpush1.bf16.msra.mxu0 %v969
        %988 = vmatprep.subr.bf16.mxu0 0
        %989 = vmatpush1.bf16.msra.mxu0 %v970
        %990 = vmatprep.subr.bf16.mxu0 0
        %991 = vmatpush1.bf16.msra.mxu0 %v971
        %992 = vmatprep.subr.bf16.mxu0 0
        %993 = vmatpush1.bf16.msra.mxu0 %v972
        %994 = vmatprep.subr.bf16.mxu0 0
        %995 = vmatpush1.bf16.msra.mxu0 %v973
        %996 = vmatprep.subr.bf16.mxu0 0
        %997 = vmatpush1.bf16.msra.mxu0 %v974
        %998 = vmatprep.subr.bf16.mxu0 0
        %999 = vmatpush1.bf16.msra.mxu0 %v975
        %1000 = vmatprep.subr.bf16.mxu0 0
        %1001 = vmatpush1.bf16.msra.mxu0 0
        %1002 = vmatprep.subr.bf16.mxu0 0
        %1003 = vmatpush1.bf16.msra.mxu0 0
        %1004 = vmatprep.subr.bf16.mxu0 0
        %1005 = vmatpush1.bf16.msra.mxu0 0
        %1006 = vmatprep.subr.bf16.mxu0 0
        %1007 = vmatpush1.bf16.msra.mxu0 0
        %1008 = vmatprep.subr.bf16.mxu0 0
        %1009 = vmatpush1.bf16.msra.mxu0 0
        %1010 = vmatprep.subr.bf16.mxu0 0
        %1011 = vmatpush1.bf16.msra.mxu0 0
        %1012 = vmatprep.subr.bf16.mxu0 0
        %1013 = vmatpush1.bf16.msra.mxu0 0
        %1014 = vmatprep.subr.bf16.mxu0 0
        %1015 = vmatpush1.bf16.msra.mxu0 0
        %1016 = vmatprep.mubr.bf16.mxu0 0
        %1017 = vmatmul.mubr.bf16.gmra.mrb[0].mxu0 %v917
        %v1018 = vpop.f32.mrb[0].mxu0
        %v1019 = vadd.f32 0.0, %v1018
        %v1020 = vpop.f32.mrb[0].mxu0
        %v1021 = vpop.f32.mrb[0].mxu0
        %v1022 = vadd.f32 0.0, %v1021
        %v1023 = vpop.f32.mrb[0].mxu0
        %1024 = vmatprep.mubr.bf16.mxu0 0
        %1025 = vmatmul.mubr.bf16.gmra.mrb[0].mxu0 %v918
        %v1026 = vpop.f32.mrb[0].mxu0
        %v1027 = vpop.f32.mrb[0].mxu0
        %v1028 = vpop.f32.mrb[0].mxu0
        %v1029 = vpop.f32.mrb[0].mxu0
        %1030 = vdwg.mxu0
        %v1047 = vunpack.c.l.b16 %v898
        %v1048 = vunpack.c.l.b16 %v899
        %v1049 = vunpack.c.l.b16 %v900
        %v1050 = vunpack.c.l.b16 %v901
        %v1051 = vunpack.c.l.b16 %v902
        %v1052 = vunpack.c.l.b16 %v903
        %v1053 = vunpack.c.l.b16 %v904
        %v1054 = vunpack.c.l.b16 %v905
        %v1055 = vunpack.c.l.b16 %v906
        %v1056 = vunpack.c.l.b16 %v907
        %v1057 = vunpack.c.l.b16 %v908
        %v1058 = vunpack.c.l.b16 %v909
        %v1059 = vunpack.c.l.b16 %v910
        %v1060 = vunpack.c.l.b16 %v911
        %v1061 = vunpack.c.l.b16 %v912
        %v1062 = vunpack.c.l.b16 %v913
        %v1063 = vpack.c.b16 %v1048, %v1047
        %v1064 = vpack.c.b16 %v1050, %v1049
        %v1065 = vpack.c.b16 %v1052, %v1051
        %v1066 = vpack.c.b16 %v1054, %v1053
        %v1067 = vpack.c.b16 %v1056, %v1055
        %v1068 = vpack.c.b16 %v1058, %v1057
        %v1069 = vpack.c.b16 %v1060, %v1059
        %v1070 = vpack.c.b16 %v1062, %v1061
        %1079 = vmatprep.subr.bf16.mxu0 0
        %1080 = vmatpush1.bf16.msra.mxu0 %v1063
        %1081 = vmatprep.subr.bf16.mxu0 0
        %1082 = vmatpush1.bf16.msra.mxu0 %v1064
        %1083 = vmatprep.subr.bf16.mxu0 0
        %1084 = vmatpush1.bf16.msra.mxu0 %v1065
        %1085 = vmatprep.subr.bf16.mxu0 0
        %1086 = vmatpush1.bf16.msra.mxu0 %v1066
        %1087 = vmatprep.subr.bf16.mxu0 0
        %1088 = vmatpush1.bf16.msra.mxu0 %v1067
        %1089 = vmatprep.subr.bf16.mxu0 0
        %1090 = vmatpush1.bf16.msra.mxu0 %v1068
        %1091 = vmatprep.subr.bf16.mxu0 0
        %1092 = vmatpush1.bf16.msra.mxu0 %v1069
        %1093 = vmatprep.subr.bf16.mxu0 0
        %1094 = vmatpush1.bf16.msra.mxu0 %v1070
        %1095 = vmatprep.subr.bf16.mxu0 0
        %1096 = vmatpush1.bf16.msra.mxu0 0
        %1097 = vmatprep.subr.bf16.mxu0 0
        %1098 = vmatpush1.bf16.msra.mxu0 0
        %1099 = vmatprep.subr.bf16.mxu0 0
        %1100 = vmatpush1.bf16.msra.mxu0 0
        %1101 = vmatprep.subr.bf16.mxu0 0
        %1102 = vmatpush1.bf16.msra.mxu0 0
        %1103 = vmatprep.subr.bf16.mxu0 0
        %1104 = vmatpush1.bf16.msra.mxu0 0
        %1105 = vmatprep.subr.bf16.mxu0 0
        %1106 = vmatpush1.bf16.msra.mxu0 0
        %1107 = vmatprep.subr.bf16.mxu0 0
        %1108 = vmatpush1.bf16.msra.mxu0 0
        %1109 = vmatprep.subr.bf16.mxu0 0
        %1110 = vmatpush1.bf16.msra.mxu0 0
        %1111 = vmatprep.mubr.bf16.mxu0 0
        %1112 = vmatmul.mubr.bf16.gmra.mrb[0].mxu0 %v896
        %v1113 = vpop.f32.mrb[0].mxu0
        %v1114 = vadd.f32 %v1019, %v1113
        %v1115 = vpop.f32.mrb[0].mxu0
        %v1116 = vpop.f32.mrb[0].mxu0
        %v1117 = vadd.f32 %v1022, %v1116
        %v1118 = vpop.f32.mrb[0].mxu0
        %1119 = vmatprep.mubr.bf16.mxu0 0
        %1120 = vmatmul.mubr.bf16.gmra.mrb[0].mxu0 %v897
        %v1121 = vpop.f32.mrb[0].mxu0
        %v1122 = vpop.f32.mrb[0].mxu0
        %v1123 = vpop.f32.mrb[0].mxu0
        %v1124 = vpop.f32.mrb[0].mxu0
        %1125 = vdwg.mxu0
        %v1126 = vld [vmem:[#allocation2 + $0x9] sm:$0xff]
        %v1127 = vld [vmem:[#allocation2 + $0x11] sm:$0xff]
        %v1128 = vld [vmem:[#allocation2 + $0x19] sm:$0xff]
        %v1129 = vpack.c.bf16 %v1127, %v1126
        %v1130 = vpack.c.bf16 %v1128, %v1128
        %s1131 = scalar_lea.vmem [#allocation9], 128
        %v1132 = vld [vmem:[%s1131] sm:$0xf]
        %v1133 = vld [vmem:[%s1131 + $0x4] sm:$0xf]
        %v1134 = vld [vmem:[%s1131 + $0x8] sm:$0xf]
        %v1135 = vld [vmem:[%s1131 + $0xc] sm:$0xf]
        %v1136 = vld [vmem:[%s1131 + $0x10] sm:$0xf]
        %v1137 = vld [vmem:[%s1131 + $0x14] sm:$0xf]
        %v1138 = vld [vmem:[%s1131 + $0x18] sm:$0xf]
        %v1139 = vld [vmem:[%s1131 + $0x1c] sm:$0xf]
        %v1140 = vld [vmem:[%s1131 + $0x20] sm:$0xf]
        %v1141 = vld [vmem:[%s1131 + $0x24] sm:$0xf]
        %v1142 = vld [vmem:[%s1131 + $0x28] sm:$0xf]
        %v1143 = vld [vmem:[%s1131 + $0x2c] sm:$0xf]
        %v1144 = vld [vmem:[%s1131 + $0x30] sm:$0xf]
        %v1145 = vld [vmem:[%s1131 + $0x34] sm:$0xf]
        %v1146 = vld [vmem:[%s1131 + $0x38] sm:$0xf]
        %v1147 = vld [vmem:[%s1131 + $0x3c] sm:$0xf]
        %v1164 = vunpack.c.l.b16 %v1132
        %v1165 = vunpack.c.l.b16 %v1133
        %v1166 = vunpack.c.l.b16 %v1134
        %v1167 = vunpack.c.l.b16 %v1135
        %v1168 = vunpack.c.l.b16 %v1136
        %v1169 = vunpack.c.l.b16 %v1137
        %v1170 = vunpack.c.l.b16 %v1138
        %v1171 = vunpack.c.l.b16 %v1139
        %v1172 = vunpack.c.l.b16 %v1140
        %v1173 = vunpack.c.l.b16 %v1141
        %v1174 = vunpack.c.l.b16 %v1142
        %v1175 = vunpack.c.l.b16 %v1143
        %v1176 = vunpack.c.l.b16 %v1144
        %v1177 = vunpack.c.l.b16 %v1145
        %v1178 = vunpack.c.l.b16 %v1146
        %v1179 = vunpack.c.l.b16 %v1147
        %v1180 = vpack.c.b16 %v1165, %v1164
        %v1181 = vpack.c.b16 %v1167, %v1166
        %v1182 = vpack.c.b16 %v1169, %v1168
        %v1183 = vpack.c.b16 %v1171, %v1170
        %v1184 = vpack.c.b16 %v1173, %v1172
        %v1185 = vpack.c.b16 %v1175, %v1174
        %v1186 = vpack.c.b16 %v1177, %v1176
        %v1187 = vpack.c.b16 %v1179, %v1178
        %1196 = vmatprep.subr.bf16.mxu0 0
        %1197 = vmatpush1.bf16.msra.mxu0 %v1180
        %1198 = vmatprep.subr.bf16.mxu0 0
        %1199 = vmatpush1.bf16.msra.mxu0 %v1181
        %1200 = vmatprep.subr.bf16.mxu0 0
        %1201 = vmatpush1.bf16.msra.mxu0 %v1182
        %1202 = vmatprep.subr.bf16.mxu0 0
        %1203 = vmatpush1.bf16.msra.mxu0 %v1183
        %1204 = vmatprep.subr.bf16.mxu0 0
        %1205 = vmatpush1.bf16.msra.mxu0 %v1184
        %1206 = vmatprep.subr.bf16.mxu0 0
        %1207 = vmatpush1.bf16.msra.mxu0 %v1185
        %1208 = vmatprep.subr.bf16.mxu0 0
        %1209 = vmatpush1.bf16.msra.mxu0 %v1186
        %1210 = vmatprep.subr.bf16.mxu0 0
        %1211 = vmatpush1.bf16.msra.mxu0 %v1187
        %1212 = vmatprep.subr.bf16.mxu0 0
        %1213 = vmatpush1.bf16.msra.mxu0 0
        %1214 = vmatprep.subr.bf16.mxu0 0
        %1215 = vmatpush1.bf16.msra.mxu0 0
        %1216 = vmatprep.subr.bf16.mxu0 0
        %1217 = vmatpush1.bf16.msra.mxu0 0
        %1218 = vmatprep.subr.bf16.mxu0 0
        %1219 = vmatpush1.bf16.msra.mxu0 0
        %1220 = vmatprep.subr.bf16.mxu0 0
        %1221 = vmatpush1.bf16.msra.mxu0 0
        %1222 = vmatprep.subr.bf16.mxu0 0
        %1223 = vmatpush1.bf16.msra.mxu0 0
        %1224 = vmatprep.subr.bf16.mxu0 0
        %1225 = vmatpush1.bf16.msra.mxu0 0
        %1226 = vmatprep.subr.bf16.mxu0 0
        %1227 = vmatpush1.bf16.msra.mxu0 0
        %1228 = vmatprep.mubr.bf16.mxu0 0
        %1229 = vmatmul.mubr.bf16.gmra.mrb[0].mxu0 %v1129
        %v1230 = vpop.f32.mrb[0].mxu0
        %v1231 = vadd.f32 0.0, %v1230
        %v1232 = vpop.f32.mrb[0].mxu0
        %v1233 = vpop.f32.mrb[0].mxu0
        %v1234 = vadd.f32 0.0, %v1233
        %v1235 = vpop.f32.mrb[0].mxu0
        %1236 = vmatprep.mubr.bf16.mxu0 0
        %1237 = vmatmul.mubr.bf16.gmra.mrb[0].mxu0 %v1130
        %v1238 = vpop.f32.mrb[0].mxu0
        %v1239 = vpop.f32.mrb[0].mxu0
        %v1240 = vpop.f32.mrb[0].mxu0
        %v1241 = vpop.f32.mrb[0].mxu0
        %1242 = vdwg.mxu0
        %v1243 = vadd.f32 %v1114, %v1231
        %v1244 = vadd.f32 %v1117, %v1234
        %v1245 = vld [vmem:[%s6] sm:$0x1]
        %v1247 = vlaneseq
        %v1248 = vshrl.u32 %v1247, 7
        %v1249 = vsub.s32 0, %v1248
        %v1250 = vrot.slane %v1245, %v1249
        %v1252 = vadd.f32 %v1243, %v1250
        %v1253 = vadd.f32 %v1244, %v1250
        %v1254 = vsub.f32 0.0, %v1252
        %v1255 = vsub.f32 0.0, %v1253
        %v1256 = vmul.f32 %v1254, 1.442695
        %v1257 = vpow.pop %v1256
        %v1258 = vmul.f32 %v1255, 1.442695
        %v1259 = vpow.pop %v1258
        %v1260 = vadd.f32 %v1257, 1.0
        %v1261 = vadd.f32 %v1259, 1.0
        %v1262 = vrcp.pop %v1260
        %v1263 = vrcp.pop %v1261
        %v1264 = vld [vmem:[%s344 + $0x8] sm:$0xff]
        %v1265 = vld [vmem:[%s344 + $0x10] sm:$0xff]
        %v1266 = vmul.f32 %v869, %v1262
        %v1267 = vmul.f32 %v870, %v1263
        %v1268 = vadd.f32 %v1266, %v1264
        %v1269 = vadd.f32 %v1267, %v1265
        %1270 = vst [vmem:[%s396] sm:$0xff] %v1268
        %1271 = vst [vmem:[%s396 + $0x8] sm:$0xff] %v1269
        %s1272 = sand.u32 %s198, 1
        %s1273 = scalar_lea.sflag [#allocation5], %s1272
        %s1274 = sand.u32 %s198, 1
        %s1275 = smul.addr %s1274, 16
        %s1276 = scalar_lea.vmem [#allocation11], %s1275
        %s1277 = sand.u32 %s224, 1
        %s1278 = scalar_lea.sflag [#allocation13], %s1277
        %s1279 = sand.u32 %s224, 1
        %s1280 = smul.addr %s1279, 16
        %s1281 = scalar_lea.vmem [#allocation12], %s1280
        // Predicated region
        $region65: #{tpu_custom_call.1} parent=47 // pred_check
          %p1282 = pneg %p208
        $region66: #{tpu_custom_call.1} parent=47 // pred_check_branch
          %1284 = sbr.rel (%p1282) target = $region68
        $region67: #{tpu_custom_call.1} parent=47 // pred_region
          %s1286 = ssub.s32 256, 256
          %1287 = vsyncadd %s1273, %s1286
          %s1288 = smul.addr %s33, 2
          %s1289 = smul.addr %s1288, 128
          %s1290 = scalar_lea.hbm %s7, %s1289
          %s1291 = sshll.u32 %s1276, 4
          %s1292 = int_to_ptr.vmem [resolvable:$true] %s1291
          %1297 = dma.vmem_to_hbm [thread:$0]  %s1292, 256, %s1290, %s1273, 128, 128, 8
        $region68: #{tpu_custom_call.1} parent=47 // pred_fallthru
          _
        // Predicated region
        $region69: #{tpu_custom_call.1} parent=47 // pred_check
          %p1298 = pneg %p234
        $region70: #{tpu_custom_call.1} parent=47 // pred_check_branch
          %1300 = sbr.rel (%p1298) target = $region72
        $region71: #{tpu_custom_call.1} parent=47 // pred_region
          %s1302 = ssub.s32 256, 256
          %1303 = vsyncadd %s1278, %s1302
          %s1304 = smul.addr %s33, 2
          %s1305 = smul.addr %s1304, 128
          %s1306 = scalar_lea.hbm %s8, %s1305
          %s1307 = sshll.u32 %s1281, 4
          %s1308 = int_to_ptr.vmem [resolvable:$true] %s1307
          %1313 = dma.vmem_to_hbm [thread:$0]  %s1308, 256, %s1306, %s1278, 128, 128, 8
        $region72: #{tpu_custom_call.1} parent=47 // pred_fallthru
          _
      $region48: #{tpu_custom_call.1} parent=5 // pred_fallthru
        _
      %p1314 = scmp.le.s32.totalorder 2, %s28
      // Predicated region
      $region73: #{tpu_custom_call.1} parent=5 // pred_check
        %p1315 = pneg %p1314
      $region74: #{tpu_custom_call.1} parent=5 // pred_check_branch
        %1317 = sbr.rel (%p1315) target = $region76
      $region75: #{tpu_custom_call.1} parent=5 // pred_region
        %s1318 = ssub.s32 %s28, 2
        // Predicated region
        $region77: #{tpu_custom_call.1} parent=75 // pred_check
          %p1319 = pneg %p214
        $region78: #{tpu_custom_call.1} parent=75 // pred_check_branch
          %1321 = sbr.rel (%p1319) target = $region80
        $region79: #{tpu_custom_call.1} parent=75 // pred_region
          %s1322 = sand.u32 %s199, 1
          %s1323 = scalar_lea.sflag [#allocation5], %s1322
          %s1324 = sand.u32 %s199, 1
          %s1325 = smul.addr %s1324, 16
          %s1326 = scalar_lea.vmem [#allocation11], %s1325
          %1327 = dma.done %s1323, 256
        $region80: #{tpu_custom_call.1} parent=75 // pred_fallthru
          _
        // Predicated region
        $region81: #{tpu_custom_call.1} parent=75 // pred_check
          %p1328 = pneg %p240
        $region82: #{tpu_custom_call.1} parent=75 // pred_check_branch
          %1330 = sbr.rel (%p1328) target = $region84
        $region83: #{tpu_custom_call.1} parent=75 // pred_region
          %s1331 = sand.u32 %s225, 1
          %s1332 = scalar_lea.sflag [#allocation13], %s1331
          %s1333 = sand.u32 %s225, 1
          %s1334 = smul.addr %s1333, 16
          %s1335 = scalar_lea.vmem [#allocation12], %s1334
          %1336 = dma.done %s1332, 256
        $region84: #{tpu_custom_call.1} parent=75 // pred_fallthru
          _
      $region76: #{tpu_custom_call.1} parent=5 // pred_fallthru
        _
    $region6: #{tpu_custom_call.1} parent=1 // loop_footer
      %s32 = sadd.s32 1, %s28
    $region7: #{tpu_custom_call.1} parent=1 // loop_footer_branch
      %27 = sbr.rel target = $region3
    $region8: #{tpu_custom_call.1} parent=1 // loop_exit
      _
    %1337 = vsyncpa [#allocation4], 1
    %s1338 = scalar_lea.sflag [#allocation4], 1
    %1339 = vsyncpa %s1338, 1
    %1340 = vsyncpa [#allocation7], 1
    %s1341 = scalar_lea.sflag [#allocation7], 1
    %1342 = vsyncpa %s1341, 1
    %1343 = vsyncpa [#allocation10], 1
    %1344 = vsyncpa [#allocation5], 1
    %s1345 = scalar_lea.sflag [#allocation5], 1
    %1346 = vsyncpa %s1345, 1
    %1347 = vsyncpa [#allocation13], 1
    %s1348 = scalar_lea.sflag [#allocation13], 1
    %1349 = vsyncpa %s1348, 1

</llo_original>
